<compile_context>
chip_gen: v5e
topology: v5e:2x2
jax: 0.10.0
libtpu: 0.0.40
codegen_flags: <defaults>
</compile_context>

<pallas_src>
import functools

import jax
import jax.numpy as jnp
from jax.experimental import pallas as pl
from jax.experimental.pallas import tpu as pltpu


# ----------------------------------------------------------------------------
# Pallas kernel: the full-time recurrence of ONE direction of one LSTM layer.
# Grid = (2,) over direction ("parallel"); the time loop is in-kernel.
# Kernel views (direction dim squeezed via None in block_shape):
#   lens_ref : (B, 1)  int32   sequence lengths
#   pre_ref  : (T, B, 4H) f32  precomputed x @ W_ih + b_ih + b_hh
#   whh_ref  : (H, 4H) bf16    recurrent weights, gate order i|f|g|o (PyTorch)
#   out_ref  : (T, B, H) f32   hidden outputs (zeroed past each seq length)
#   h_ref/c_ref : (B, H) f32   VMEM carries
# ----------------------------------------------------------------------------
def _bilstm_recurrence_kernel(lens_ref, pre_ref, whh_ref, out_ref, h_ref, c_ref):
    T = pre_ref.shape[0]
    H = whh_ref.shape[0]

    h_ref[...] = jnp.zeros_like(h_ref)
    c_ref[...] = jnp.zeros_like(c_ref)

    lens = lens_ref[...]            # (B, 1) int32
    whh = whh_ref[...]              # (H, 4H) bf16, hoisted out of the loop

    def step(t, carry):
        h = h_ref[...]              # (B, H) f32
        c = c_ref[...]              # (B, H) f32
        # Single fused-gate matmul on the serial path (bf16 operands, f32 acc).
        z = pre_ref[t] + jnp.dot(h.astype(whh.dtype), whh,
                                 preferred_element_type=jnp.float32)  # (B, 4H)
        i_g = jax.nn.sigmoid(z[:, 0 * H:1 * H])
        f_g = jax.nn.sigmoid(z[:, 1 * H:2 * H])
        g_g = jnp.tanh(z[:, 2 * H:3 * H])
        o_g = jax.nn.sigmoid(z[:, 3 * H:4 * H])

        c_new = f_g * c + i_g * g_g
        h_new = o_g * jnp.tanh(c_new)

        # Packed-sequence semantics: freeze state and zero output past length.
        m = t < lens                # (B, 1) bool
        c_ref[...] = jnp.where(m, c_new, c)
        h_ref[...] = jnp.where(m, h_new, h)
        out_ref[t] = jnp.where(m, h_new, 0.0)
        return carry

    # Small static T -> fully unroll for LLO scheduling visibility.
    jax.lax.fori_loop(0, T, step, 0, unroll=True)


def _bilstm_recurrence(lens_b1, pre, whh):
    """pre: (2, T, B, 4H) f32, whh: (2, H, 4H) bf16 -> (2, T, B, H) f32."""
    _, T, B, G = pre.shape
    H = whh.shape[1]
    # TODO(synk): for realistic H (>=1024) on v7x, tile the 4H axis of W_hh /
    # chunk time and raise vmem_limit_bytes; at this toy size defaults suffice.
    return pl.pallas_call(
        _bilstm_recurrence_kernel,
        out_shape=jax.ShapeDtypeStruct((2, T, B, H), jnp.float32),
        grid_spec=pltpu.PrefetchScalarGridSpec(
            num_scalar_prefetch=0,
            grid=(2,),                                        # direction: fwd, bwd
            in_specs=[
                pl.BlockSpec((B, 1), lambda d: (0, 0)),               # seq_lens
                pl.BlockSpec((None, T, B, G), lambda d: (d, 0, 0, 0)),  # pre-acts
                pl.BlockSpec((None, H, G), lambda d: (d, 0, 0)),        # W_hh
            ],
            out_specs=pl.BlockSpec((None, T, B, H), lambda d: (d, 0, 0, 0)),
            scratch_shapes=[pltpu.VMEM((B, H), jnp.float32),   # h carry
                            pltpu.VMEM((B, H), jnp.float32)],  # c carry
        ),
        compiler_params=pltpu.CompilerParams(
            # Directions are independent -> megacore-parallel on v7x.
            dimension_semantics=("parallel",)),
    )(lens_b1, pre, whh)


# ----------------------------------------------------------------------------
# Parameters (synthetic, mirroring nn.Embedding + nn.LSTM fused-gate shapes).
# Gate order i|f|g|o along the 4H axis, as in PyTorch nn.LSTM.
# ----------------------------------------------------------------------------
def init_params(key, vocab, embed_dim, hidden, num_layers):
    keys = jax.random.split(key, 1 + num_layers * 2 * 4)
    params = {"embedding": jax.random.normal(keys[0], (vocab, embed_dim),
                                             jnp.float32)}
    scale = 1.0 / jnp.sqrt(hidden)
    layers = []
    k = 1
    for layer in range(num_layers):
        d_in = embed_dim if layer == 0 else 2 * hidden
        dirs = []
        for _d in range(2):  # forward, backward
            w_ih = jax.random.uniform(keys[k + 0], (d_in, 4 * hidden),
                                      jnp.float32, -scale, scale)
            w_hh = jax.random.uniform(keys[k + 1], (hidden, 4 * hidden),
                                      jnp.float32, -scale, scale)
            b_ih = jax.random.uniform(keys[k + 2], (1, 4 * hidden),
                                      jnp.float32, -scale, scale)
            b_hh = jax.random.uniform(keys[k + 3], (1, 4 * hidden),
                                      jnp.float32, -scale, scale)
            dirs.append((w_ih, w_hh, b_ih + b_hh))
            k += 4
        layers.append(tuple(dirs))
    params["lstm"] = layers
    return params


# ----------------------------------------------------------------------------
# Forward (eval mode). Time-major throughout the layer stack.
# ----------------------------------------------------------------------------
@functools.partial(jax.jit, static_argnames=("hidden", "num_layers"))
def lstm_encoder_forward(params, seq, seq_lens, *, hidden, num_layers):
    B, T = seq.shape

    # Embedding lookup + input_dropout (identity in eval mode).
    emb = params["embedding"][seq]                            # (B, T, E)
    x = jnp.transpose(emb, (1, 0, 2))                         # (T, B, E) once

    mask_tb = (jnp.arange(T)[:, None] < seq_lens[None, :]).astype(jnp.float32)
    rev_idx = jnp.clip(seq_lens[None, :] - 1 - jnp.arange(T)[:, None], 0, T - 1)
    lens_b1 = seq_lens[:, None].astype(jnp.int32)             # (B, 1)

    def reverse_tm(v):  # reverse each sequence within its own length, time-major
        rev = jnp.take_along_axis(v, rev_idx[:, :, None], axis=0)
        return rev * mask_tb[:, :, None]

    # NOTE: pad_packed_sequence would trim T to max(seq_lens); we keep static T
    # (the example below has max(seq_lens) == T so results are identical).
    for layer in range(num_layers):
        (wih_f, whh_f, b_f), (wih_b, whh_b, b_b) = params["lstm"][layer]

        # Hoisted input projection: one big GEMM per direction over ALL steps.
        pre_f = jnp.einsum("tbd,dg->tbg", x, wih_f) + b_f               # (T,B,4H)
        pre_b = jnp.einsum("tbd,dg->tbg", reverse_tm(x), wih_b) + b_b   # (T,B,4H)
        pre = jnp.stack([pre_f, pre_b], axis=0)                         # (2,T,B,4H)
        whh = jnp.stack([whh_f, whh_b], axis=0).astype(jnp.bfloat16)    # (2,H,4H)

        out = _bilstm_recurrence(lens_b1, pre, whh)                     # (2,T,B,H)
        out_fwd = out[0]                       # already zero past each length
        out_bwd = reverse_tm(out[1])           # back to original time order
        x = jnp.concatenate([out_fwd, out_bwd], axis=-1)                # (T,B,2H)

    encoder_hidden = jnp.transpose(x, (1, 0, 2))   # (B, T, 2H); output_dropout = id
    final_hidden = encoder_hidden[jnp.arange(B), seq_lens - 1, :]       # (B, 2H)
    return final_hidden, encoder_hidden


if __name__ == "__main__":
    VOCAB, EMBED, HIDDEN, LAYERS = 50, 32, 32, 2
    B, T = 4, 8

    key = jax.random.PRNGKey(0)
    k_param, k_seq = jax.random.split(key)
    params = init_params(k_param, VOCAB, EMBED, HIDDEN, LAYERS)

    seq = jax.random.randint(k_seq, (B, T), 1, VOCAB, dtype=jnp.int32)
    seq_lens = jnp.array([8, 5, 3, 6], dtype=jnp.int32)   # max == T

    final_hidden, encoder_hidden = lstm_encoder_forward(
        params, seq, seq_lens, hidden=HIDDEN, num_layers=LAYERS)
    jax.block_until_ready((final_hidden, encoder_hidden))

    assert final_hidden.shape == (B, 2 * HIDDEN)
    assert encoder_hidden.shape == (B, T, 2 * HIDDEN)
    # Packed-sequence check: outputs past each sequence's length must be zero.
    pad_mask = (jnp.arange(T)[None, :] >= seq_lens[:, None])[:, :, None]
    assert float(jnp.abs(jnp.where(pad_mask, encoder_hidden, 0.0)).max()) == 0.0

    print("KERNEL_OK")
</pallas_src>

<mosaic_0001>
module attributes {stable_mosaic.version = 11 : i64} {
  func.func @_bilstm_recurrence_kernel(%arg0: i32, %arg1: memref<4x1xi32, #tpu.memory_space<vmem>>, %arg2: memref<1x8x4x128xf32, #tpu.memory_space<vmem>>, %arg3: memref<1x32x128xbf16, #tpu.memory_space<vmem>>, %arg4: memref<1x8x4x32xf32, #tpu.memory_space<vmem>>, %arg5: memref<4x32xf32, #tpu.memory_space<vmem>>, %arg6: memref<4x32xf32, #tpu.memory_space<vmem>>) attributes {dimension_semantics = [#tpu.dimension_semantics<parallel>], iteration_bounds = array<i64: 2>, scalar_prefetch = 0 : i64, scratch_operands = 2 : i64, tpu.core_type = #tpu.core_type<tc>, window_params = [{pipeline_mode = #tpu.pipeline_mode<synchronous>, transform_indices = @transform_0, window_bounds = array<i64: 4, 1>}, {transform_indices = @transform_1, window_bounds = array<i64: 1, 8, 4, 128>}, {transform_indices = @transform_2, window_bounds = array<i64: 1, 32, 128>}, {transform_indices = @transform_3, window_bounds = array<i64: 1, 8, 4, 32>}]} {
    %cst = arith.constant 0.000000e+00 : f32
    %0 = vector.broadcast %cst : f32 to vector<4x32xf32>
    %c0 = arith.constant 0 : index
    %c0_0 = arith.constant 0 : index
    %1 = vector.load %arg5[%c0, %c0_0] : memref<4x32xf32, #tpu.memory_space<vmem>>, vector<4x32xf32>
    tpu.vector_store %arg5[%c0, %c0_0], %0 {strides = array<i32>} : memref<4x32xf32, #tpu.memory_space<vmem>>, vector<4x32xf32>,
    %cst_1 = arith.constant 0.000000e+00 : f32
    %2 = vector.broadcast %cst_1 : f32 to vector<4x32xf32>
    %c0_2 = arith.constant 0 : index
    %c0_3 = arith.constant 0 : index
    %3 = vector.load %arg6[%c0_2, %c0_3] : memref<4x32xf32, #tpu.memory_space<vmem>>, vector<4x32xf32>
    tpu.vector_store %arg6[%c0_2, %c0_3], %2 {strides = array<i32>} : memref<4x32xf32, #tpu.memory_space<vmem>>, vector<4x32xf32>,
    %c0_4 = arith.constant 0 : index
    %c0_5 = arith.constant 0 : index
    %4 = vector.load %arg1[%c0_4, %c0_5] : memref<4x1xi32, #tpu.memory_space<vmem>>, vector<4x1xi32>
    %c0_6 = arith.constant 0 : index
    %c0_7 = arith.constant 0 : index
    %c0_8 = arith.constant 0 : index
    %5 = vector.load %arg3[%c0_6, %c0_7, %c0_8] : memref<1x32x128xbf16, #tpu.memory_space<vmem>>, vector<1x32x128xbf16>
    %6 = vector.shape_cast %5 : vector<1x32x128xbf16> to vector<32x128xbf16>
    %c0_i32 = arith.constant 0 : i32
    %c0_9 = arith.constant 0 : index
    %c0_10 = arith.constant 0 : index
    %7 = vector.load %arg5[%c0_9, %c0_10] : memref<4x32xf32, #tpu.memory_space<vmem>>, vector<4x32xf32>
    %c0_11 = arith.constant 0 : index
    %c0_12 = arith.constant 0 : index
    %8 = vector.load %arg6[%c0_11, %c0_12] : memref<4x32xf32, #tpu.memory_space<vmem>>, vector<4x32xf32>
    %c0_13 = arith.constant 0 : index
    %9 = arith.index_cast %c0_i32 : i32 to index
    %c0_14 = arith.constant 0 : index
    %c0_15 = arith.constant 0 : index
    %10 = vector.load %arg2[%c0_13, %9, %c0_14, %c0_15] : memref<1x8x4x128xf32, #tpu.memory_space<vmem>>, vector<1x1x4x128xf32>
    %11 = vector.shape_cast %10 : vector<1x1x4x128xf32> to vector<4x128xf32>
    %12 = arith.truncf %7 : vector<4x32xf32> to vector<4x32xbf16>
    %cst_16 = arith.constant dense<0.000000e+00> : vector<4x128xf32>
    %13 = tpu.matmul %12, %6, %cst_16 {dimension_numbers = #tpu.dot_dimension_numbers<[1], [0], [0], [1], [0, 0, 1, 1], [], []>} : vector<4x32xbf16>, vector<32x128xbf16>, vector<4x128xf32> -> vector<4x128xf32>
    %14 = arith.addf %11, %13 : vector<4x128xf32>
    %15 = vector.extract_strided_slice %14 {offsets = [0, 0], sizes = [4, 32], strides = [1, 1]} : vector<4x128xf32> to vector<4x32xf32>
    %16 = arith.negf %15 : vector<4x32xf32>
    %17 = math.exp %16 : vector<4x32xf32>
    %cst_17 = arith.constant 1.000000e+00 : f32
    %18 = vector.broadcast %cst_17 : f32 to vector<4x32xf32>
    %19 = arith.addf %18, %17 : vector<4x32xf32>
    %20 = arith.divf %18, %19 : vector<4x32xf32>
    %21 = vector.extract_strided_slice %14 {offsets = [0, 32], sizes = [4, 32], strides = [1, 1]} : vector<4x128xf32> to vector<4x32xf32>
    %22 = arith.negf %21 : vector<4x32xf32>
    %23 = math.exp %22 : vector<4x32xf32>
    %cst_18 = arith.constant 1.000000e+00 : f32
    %24 = vector.broadcast %cst_18 : f32 to vector<4x32xf32>
    %25 = arith.addf %24, %23 : vector<4x32xf32>
    %26 = arith.divf %24, %25 : vector<4x32xf32>
    %27 = vector.extract_strided_slice %14 {offsets = [0, 64], sizes = [4, 32], strides = [1, 1]} : vector<4x128xf32> to vector<4x32xf32>
    %28 = math.tanh %27 : vector<4x32xf32>
    %29 = vector.extract_strided_slice %14 {offsets = [0, 96], sizes = [4, 32], strides = [1, 1]} : vector<4x128xf32> to vector<4x32xf32>
    %30 = arith.negf %29 : vector<4x32xf32>
    %31 = math.exp %30 : vector<4x32xf32>
    %cst_19 = arith.constant 1.000000e+00 : f32
    %32 = vector.broadcast %cst_19 : f32 to vector<4x32xf32>
    %33 = arith.addf %32, %31 : vector<4x32xf32>
    %34 = arith.divf %32, %33 : vector<4x32xf32>
    %35 = arith.mulf %26, %8 : vector<4x32xf32>
    %36 = arith.mulf %20, %28 : vector<4x32xf32>
    %37 = arith.addf %35, %36 : vector<4x32xf32>
    %38 = math.tanh %37 : vector<4x32xf32>
    %39 = arith.mulf %34, %38 : vector<4x32xf32>
    %40 = vector.broadcast %c0_i32 : i32 to vector<4x1xi32>
    %41 = arith.cmpi slt, %40, %4 : vector<4x1xi32>
    %42 = vector.shape_cast %41 : vector<4x1xi1> to vector<4x1xi1>
    %43 = vector.broadcast %42 : vector<4x1xi1> to vector<4x32xi1>
    %44 = arith.select %43, %37, %8 : vector<4x32xi1>, vector<4x32xf32>
    %c0_20 = arith.constant 0 : index
    %c0_21 = arith.constant 0 : index
    %45 = vector.load %arg6[%c0_20, %c0_21] : memref<4x32xf32, #tpu.memory_space<vmem>>, vector<4x32xf32>
    tpu.vector_store %arg6[%c0_20, %c0_21], %44 {strides = array<i32>} : memref<4x32xf32, #tpu.memory_space<vmem>>, vector<4x32xf32>,
    %46 = vector.shape_cast %41 : vector<4x1xi1> to vector<4x1xi1>
    %47 = vector.broadcast %46 : vector<4x1xi1> to vector<4x32xi1>
    %48 = arith.select %47, %39, %7 : vector<4x32xi1>, vector<4x32xf32>
    %c0_22 = arith.constant 0 : index
    %c0_23 = arith.constant 0 : index
    %49 = vector.load %arg5[%c0_22, %c0_23] : memref<4x32xf32, #tpu.memory_space<vmem>>, vector<4x32xf32>
    tpu.vector_store %arg5[%c0_22, %c0_23], %48 {strides = array<i32>} : memref<4x32xf32, #tpu.memory_space<vmem>>, vector<4x32xf32>,
    %cst_24 = arith.constant 0.000000e+00 : f32
    %50 = vector.shape_cast %41 : vector<4x1xi1> to vector<4x1xi1>
    %51 = vector.broadcast %50 : vector<4x1xi1> to vector<4x32xi1>
    %52 = vector.broadcast %cst_24 : f32 to vector<4x32xf32>
    %53 = arith.select %51, %39, %52 : vector<4x32xi1>, vector<4x32xf32>
    %c0_25 = arith.constant 0 : index
    %54 = arith.index_cast %c0_i32 : i32 to index
    %c0_26 = arith.constant 0 : index
    %c0_27 = arith.constant 0 : index
    %55 = vector.load %arg4[%c0_25, %54, %c0_26, %c0_27] : memref<1x8x4x32xf32, #tpu.memory_space<vmem>>, vector<1x1x4x32xf32>
    %56 = vector.shape_cast %55 : vector<1x1x4x32xf32> to vector<4x32xf32>
    %57 = vector.shape_cast %53 : vector<4x32xf32> to vector<1x1x4x32xf32>
    tpu.vector_store %arg4[%c0_25, %54, %c0_26, %c0_27], %57 {strides = array<i32>} : memref<1x8x4x32xf32, #tpu.memory_space<vmem>>, vector<1x1x4x32xf32>,
    %c1_i32 = arith.constant 1 : i32
    %c0_28 = arith.constant 0 : index
    %c0_29 = arith.constant 0 : index
    %58 = vector.load %arg5[%c0_28, %c0_29] : memref<4x32xf32, #tpu.memory_space<vmem>>, vector<4x32xf32>
    %c0_30 = arith.constant 0 : index
    %c0_31 = arith.constant 0 : index
    %59 = vector.load %arg6[%c0_30, %c0_31] : memref<4x32xf32, #tpu.memory_space<vmem>>, vector<4x32xf32>
    %c0_32 = arith.constant 0 : index
    %60 = arith.index_cast %c1_i32 : i32 to index
    %c0_33 = arith.constant 0 : index
    %c0_34 = arith.constant 0 : index
    %61 = vector.load %arg2[%c0_32, %60, %c0_33, %c0_34] : memref<1x8x4x128xf32, #tpu.memory_space<vmem>>, vector<1x1x4x128xf32>
    %62 = vector.shape_cast %61 : vector<1x1x4x128xf32> to vector<4x128xf32>
    %63 = arith.truncf %58 : vector<4x32xf32> to vector<4x32xbf16>
    %cst_35 = arith.constant dense<0.000000e+00> : vector<4x128xf32>
    %64 = tpu.matmul %63, %6, %cst_35 {dimension_numbers = #tpu.dot_dimension_numbers<[1], [0], [0], [1], [0, 0, 1, 1], [], []>} : vector<4x32xbf16>, vector<32x128xbf16>, vector<4x128xf32> -> vector<4x128xf32>
    %65 = arith.addf %62, %64 : vector<4x128xf32>
    %66 = vector.extract_strided_slice %65 {offsets = [0, 0], sizes = [4, 32], strides = [1, 1]} : vector<4x128xf32> to vector<4x32xf32>
    %67 = arith.negf %66 : vector<4x32xf32>
    %68 = math.exp %67 : vector<4x32xf32>
    %cst_36 = arith.constant 1.000000e+00 : f32
    %69 = vector.broadcast %cst_36 : f32 to vector<4x32xf32>
    %70 = arith.addf %69, %68 : vector<4x32xf32>
    %71 = arith.divf %69, %70 : vector<4x32xf32>
    %72 = vector.extract_strided_slice %65 {offsets = [0, 32], sizes = [4, 32], strides = [1, 1]} : vector<4x128xf32> to vector<4x32xf32>
    %73 = arith.negf %72 : vector<4x32xf32>
    %74 = math.exp %73 : vector<4x32xf32>
    %cst_37 = arith.constant 1.000000e+00 : f32
    %75 = vector.broadcast %cst_37 : f32 to vector<4x32xf32>
    %76 = arith.addf %75, %74 : vector<4x32xf32>
    %77 = arith.divf %75, %76 : vector<4x32xf32>
    %78 = vector.extract_strided_slice %65 {offsets = [0, 64], sizes = [4, 32], strides = [1, 1]} : vector<4x128xf32> to vector<4x32xf32>
    %79 = math.tanh %78 : vector<4x32xf32>
    %80 = vector.extract_strided_slice %65 {offsets = [0, 96], sizes = [4, 32], strides = [1, 1]} : vector<4x128xf32> to vector<4x32xf32>
    %81 = arith.negf %80 : vector<4x32xf32>
    %82 = math.exp %81 : vector<4x32xf32>
    %cst_38 = arith.constant 1.000000e+00 : f32
    %83 = vector.broadcast %cst_38 : f32 to vector<4x32xf32>
    %84 = arith.addf %83, %82 : vector<4x32xf32>
    %85 = arith.divf %83, %84 : vector<4x32xf32>
    %86 = arith.mulf %77, %59 : vector<4x32xf32>
    %87 = arith.mulf %71, %79 : vector<4x32xf32>
    %88 = arith.addf %86, %87 : vector<4x32xf32>
    %89 = math.tanh %88 : vector<4x32xf32>
    %90 = arith.mulf %85, %89 : vector<4x32xf32>
    %91 = vector.broadcast %c1_i32 : i32 to vector<4x1xi32>
    %92 = arith.cmpi slt, %91, %4 : vector<4x1xi32>
    %93 = vector.shape_cast %92 : vector<4x1xi1> to vector<4x1xi1>
    %94 = vector.broadcast %93 : vector<4x1xi1> to vector<4x32xi1>
    %95 = arith.select %94, %88, %59 : vector<4x32xi1>, vector<4x32xf32>
    %c0_39 = arith.constant 0 : index
    %c0_40 = arith.constant 0 : index
    %96 = vector.load %arg6[%c0_39, %c0_40] : memref<4x32xf32, #tpu.memory_space<vmem>>, vector<4x32xf32>
    tpu.vector_store %arg6[%c0_39, %c0_40], %95 {strides = array<i32>} : memref<4x32xf32, #tpu.memory_space<vmem>>, vector<4x32xf32>,
    %97 = vector.shape_cast %92 : vector<4x1xi1> to vector<4x1xi1>
    %98 = vector.broadcast %97 : vector<4x1xi1> to vector<4x32xi1>
    %99 = arith.select %98, %90, %58 : vector<4x32xi1>, vector<4x32xf32>
    %c0_41 = arith.constant 0 : index
    %c0_42 = arith.constant 0 : index
    %100 = vector.load %arg5[%c0_41, %c0_42] : memref<4x32xf32, #tpu.memory_space<vmem>>, vector<4x32xf32>
    tpu.vector_store %arg5[%c0_41, %c0_42], %99 {strides = array<i32>} : memref<4x32xf32, #tpu.memory_space<vmem>>, vector<4x32xf32>,
    %cst_43 = arith.constant 0.000000e+00 : f32
    %101 = vector.shape_cast %92 : vector<4x1xi1> to vector<4x1xi1>
    %102 = vector.broadcast %101 : vector<4x1xi1> to vector<4x32xi1>
    %103 = vector.broadcast %cst_43 : f32 to vector<4x32xf32>
    %104 = arith.select %102, %90, %103 : vector<4x32xi1>, vector<4x32xf32>
    %c0_44 = arith.constant 0 : index
    %105 = arith.index_cast %c1_i32 : i32 to index
    %c0_45 = arith.constant 0 : index
    %c0_46 = arith.constant 0 : index
    %106 = vector.load %arg4[%c0_44, %105, %c0_45, %c0_46] : memref<1x8x4x32xf32, #tpu.memory_space<vmem>>, vector<1x1x4x32xf32>
    %107 = vector.shape_cast %106 : vector<1x1x4x32xf32> to vector<4x32xf32>
    %108 = vector.shape_cast %104 : vector<4x32xf32> to vector<1x1x4x32xf32>
    tpu.vector_store %arg4[%c0_44, %105, %c0_45, %c0_46], %108 {strides = array<i32>} : memref<1x8x4x32xf32, #tpu.memory_space<vmem>>, vector<1x1x4x32xf32>,
    %c2_i32 = arith.constant 2 : i32
    %c0_47 = arith.constant 0 : index
    %c0_48 = arith.constant 0 : index
    %109 = vector.load %arg5[%c0_47, %c0_48] : memref<4x32xf32, #tpu.memory_space<vmem>>, vector<4x32xf32>
    %c0_49 = arith.constant 0 : index
    %c0_50 = arith.constant 0 : index
    %110 = vector.load %arg6[%c0_49, %c0_50] : memref<4x32xf32, #tpu.memory_space<vmem>>, vector<4x32xf32>
    %c0_51 = arith.constant 0 : index
    %111 = arith.index_cast %c2_i32 : i32 to index
    %c0_52 = arith.constant 0 : index
    %c0_53 = arith.constant 0 : index
    %112 = vector.load %arg2[%c0_51, %111, %c0_52, %c0_53] : memref<1x8x4x128xf32, #tpu.memory_space<vmem>>, vector<1x1x4x128xf32>
    %113 = vector.shape_cast %112 : vector<1x1x4x128xf32> to vector<4x128xf32>
    %114 = arith.truncf %109 : vector<4x32xf32> to vector<4x32xbf16>
    %cst_54 = arith.constant dense<0.000000e+00> : vector<4x128xf32>
    %115 = tpu.matmul %114, %6, %cst_54 {dimension_numbers = #tpu.dot_dimension_numbers<[1], [0], [0], [1], [0, 0, 1, 1], [], []>} : vector<4x32xbf16>, vector<32x128xbf16>, vector<4x128xf32> -> vector<4x128xf32>
    %116 = arith.addf %113, %115 : vector<4x128xf32>
    %117 = vector.extract_strided_slice %116 {offsets = [0, 0], sizes = [4, 32], strides = [1, 1]} : vector<4x128xf32> to vector<4x32xf32>
    %118 = arith.negf %117 : vector<4x32xf32>
    %119 = math.exp %118 : vector<4x32xf32>
    %cst_55 = arith.constant 1.000000e+00 : f32
    %120 = vector.broadcast %cst_55 : f32 to vector<4x32xf32>
    %121 = arith.addf %120, %119 : vector<4x32xf32>
    %122 = arith.divf %120, %121 : vector<4x32xf32>
    %123 = vector.extract_strided_slice %116 {offsets = [0, 32], sizes = [4, 32], strides = [1, 1]} : vector<4x128xf32> to vector<4x32xf32>
    %124 = arith.negf %123 : vector<4x32xf32>
    %125 = math.exp %124 : vector<4x32xf32>
    %cst_56 = arith.constant 1.000000e+00 : f32
    %126 = vector.broadcast %cst_56 : f32 to vector<4x32xf32>
    %127 = arith.addf %126, %125 : vector<4x32xf32>
    %128 = arith.divf %126, %127 : vector<4x32xf32>
    %129 = vector.extract_strided_slice %116 {offsets = [0, 64], sizes = [4, 32], strides = [1, 1]} : vector<4x128xf32> to vector<4x32xf32>
    %130 = math.tanh %129 : vector<4x32xf32>
    %131 = vector.extract_strided_slice %116 {offsets = [0, 96], sizes = [4, 32], strides = [1, 1]} : vector<4x128xf32> to vector<4x32xf32>
    %132 = arith.negf %131 : vector<4x32xf32>
    %133 = math.exp %132 : vector<4x32xf32>
    %cst_57 = arith.constant 1.000000e+00 : f32
    %134 = vector.broadcast %cst_57 : f32 to vector<4x32xf32>
    %135 = arith.addf %134, %133 : vector<4x32xf32>
    %136 = arith.divf %134, %135 : vector<4x32xf32>
    %137 = arith.mulf %128, %110 : vector<4x32xf32>
    %138 = arith.mulf %122, %130 : vector<4x32xf32>
    %139 = arith.addf %137, %138 : vector<4x32xf32>
    %140 = math.tanh %139 : vector<4x32xf32>
    %141 = arith.mulf %136, %140 : vector<4x32xf32>
    %142 = vector.broadcast %c2_i32 : i32 to vector<4x1xi32>
    %143 = arith.cmpi slt, %142, %4 : vector<4x1xi32>
    %144 = vector.shape_cast %143 : vector<4x1xi1> to vector<4x1xi1>
    %145 = vector.broadcast %144 : vector<4x1xi1> to vector<4x32xi1>
    %146 = arith.select %145, %139, %110 : vector<4x32xi1>, vector<4x32xf32>
    %c0_58 = arith.constant 0 : index
    %c0_59 = arith.constant 0 : index
    %147 = vector.load %arg6[%c0_58, %c0_59] : memref<4x32xf32, #tpu.memory_space<vmem>>, vector<4x32xf32>
    tpu.vector_store %arg6[%c0_58, %c0_59], %146 {strides = array<i32>} : memref<4x32xf32, #tpu.memory_space<vmem>>, vector<4x32xf32>,
    %148 = vector.shape_cast %143 : vector<4x1xi1> to vector<4x1xi1>
    %149 = vector.broadcast %148 : vector<4x1xi1> to vector<4x32xi1>
    %150 = arith.select %149, %141, %109 : vector<4x32xi1>, vector<4x32xf32>
    %c0_60 = arith.constant 0 : index
    %c0_61 = arith.constant 0 : index
    %151 = vector.load %arg5[%c0_60, %c0_61] : memref<4x32xf32, #tpu.memory_space<vmem>>, vector<4x32xf32>
    tpu.vector_store %arg5[%c0_60, %c0_61], %150 {strides = array<i32>} : memref<4x32xf32, #tpu.memory_space<vmem>>, vector<4x32xf32>,
    %cst_62 = arith.constant 0.000000e+00 : f32
    %152 = vector.shape_cast %143 : vector<4x1xi1> to vector<4x1xi1>
    %153 = vector.broadcast %152 : vector<4x1xi1> to vector<4x32xi1>
    %154 = vector.broadcast %cst_62 : f32 to vector<4x32xf32>
    %155 = arith.select %153, %141, %154 : vector<4x32xi1>, vector<4x32xf32>
    %c0_63 = arith.constant 0 : index
    %156 = arith.index_cast %c2_i32 : i32 to index
    %c0_64 = arith.constant 0 : index
    %c0_65 = arith.constant 0 : index
    %157 = vector.load %arg4[%c0_63, %156, %c0_64, %c0_65] : memref<1x8x4x32xf32, #tpu.memory_space<vmem>>, vector<1x1x4x32xf32>
    %158 = vector.shape_cast %157 : vector<1x1x4x32xf32> to vector<4x32xf32>
    %159 = vector.shape_cast %155 : vector<4x32xf32> to vector<1x1x4x32xf32>
    tpu.vector_store %arg4[%c0_63, %156, %c0_64, %c0_65], %159 {strides = array<i32>} : memref<1x8x4x32xf32, #tpu.memory_space<vmem>>, vector<1x1x4x32xf32>,
    %c3_i32 = arith.constant 3 : i32
    %c0_66 = arith.constant 0 : index
    %c0_67 = arith.constant 0 : index
    %160 = vector.load %arg5[%c0_66, %c0_67] : memref<4x32xf32, #tpu.memory_space<vmem>>, vector<4x32xf32>
    %c0_68 = arith.constant 0 : index
    %c0_69 = arith.constant 0 : index
    %161 = vector.load %arg6[%c0_68, %c0_69] : memref<4x32xf32, #tpu.memory_space<vmem>>, vector<4x32xf32>
    %c0_70 = arith.constant 0 : index
    %162 = arith.index_cast %c3_i32 : i32 to index
    %c0_71 = arith.constant 0 : index
    %c0_72 = arith.constant 0 : index
    %163 = vector.load %arg2[%c0_70, %162, %c0_71, %c0_72] : memref<1x8x4x128xf32, #tpu.memory_space<vmem>>, vector<1x1x4x128xf32>
    %164 = vector.shape_cast %163 : vector<1x1x4x128xf32> to vector<4x128xf32>
    %165 = arith.truncf %160 : vector<4x32xf32> to vector<4x32xbf16>
    %cst_73 = arith.constant dense<0.000000e+00> : vector<4x128xf32>
    %166 = tpu.matmul %165, %6, %cst_73 {dimension_numbers = #tpu.dot_dimension_numbers<[1], [0], [0], [1], [0, 0, 1, 1], [], []>} : vector<4x32xbf16>, vector<32x128xbf16>, vector<4x128xf32> -> vector<4x128xf32>
    %167 = arith.addf %164, %166 : vector<4x128xf32>
    %168 = vector.extract_strided_slice %167 {offsets = [0, 0], sizes = [4, 32], strides = [1, 1]} : vector<4x128xf32> to vector<4x32xf32>
    %169 = arith.negf %168 : vector<4x32xf32>
    %170 = math.exp %169 : vector<4x32xf32>
    %cst_74 = arith.constant 1.000000e+00 : f32
    %171 = vector.broadcast %cst_74 : f32 to vector<4x32xf32>
    %172 = arith.addf %171, %170 : vector<4x32xf32>
    %173 = arith.divf %171, %172 : vector<4x32xf32>
    %174 = vector.extract_strided_slice %167 {offsets = [0, 32], sizes = [4, 32], strides = [1, 1]} : vector<4x128xf32> to vector<4x32xf32>
    %175 = arith.negf %174 : vector<4x32xf32>
    %176 = math.exp %175 : vector<4x32xf32>
    %cst_75 = arith.constant 1.000000e+00 : f32
    %177 = vector.broadcast %cst_75 : f32 to vector<4x32xf32>
    %178 = arith.addf %177, %176 : vector<4x32xf32>
    %179 = arith.divf %177, %178 : vector<4x32xf32>
    %180 = vector.extract_strided_slice %167 {offsets = [0, 64], sizes = [4, 32], strides = [1, 1]} : vector<4x128xf32> to vector<4x32xf32>
    %181 = math.tanh %180 : vector<4x32xf32>
    %182 = vector.extract_strided_slice %167 {offsets = [0, 96], sizes = [4, 32], strides = [1, 1]} : vector<4x128xf32> to vector<4x32xf32>
    %183 = arith.negf %182 : vector<4x32xf32>
    %184 = math.exp %183 : vector<4x32xf32>
    %cst_76 = arith.constant 1.000000e+00 : f32
    %185 = vector.broadcast %cst_76 : f32 to vector<4x32xf32>
    %186 = arith.addf %185, %184 : vector<4x32xf32>
    %187 = arith.divf %185, %186 : vector<4x32xf32>
    %188 = arith.mulf %179, %161 : vector<4x32xf32>
    %189 = arith.mulf %173, %181 : vector<4x32xf32>
    %190 = arith.addf %188, %189 : vector<4x32xf32>
    %191 = math.tanh %190 : vector<4x32xf32>
    %192 = arith.mulf %187, %191 : vector<4x32xf32>
    %193 = vector.broadcast %c3_i32 : i32 to vector<4x1xi32>
    %194 = arith.cmpi slt, %193, %4 : vector<4x1xi32>
    %195 = vector.shape_cast %194 : vector<4x1xi1> to vector<4x1xi1>
    %196 = vector.broadcast %195 : vector<4x1xi1> to vector<4x32xi1>
    %197 = arith.select %196, %190, %161 : vector<4x32xi1>, vector<4x32xf32>
    %c0_77 = arith.constant 0 : index
    %c0_78 = arith.constant 0 : index
    %198 = vector.load %arg6[%c0_77, %c0_78] : memref<4x32xf32, #tpu.memory_space<vmem>>, vector<4x32xf32>
    tpu.vector_store %arg6[%c0_77, %c0_78], %197 {strides = array<i32>} : memref<4x32xf32, #tpu.memory_space<vmem>>, vector<4x32xf32>,
    %199 = vector.shape_cast %194 : vector<4x1xi1> to vector<4x1xi1>
    %200 = vector.broadcast %199 : vector<4x1xi1> to vector<4x32xi1>
    %201 = arith.select %200, %192, %160 : vector<4x32xi1>, vector<4x32xf32>
    %c0_79 = arith.constant 0 : index
    %c0_80 = arith.constant 0 : index
    %202 = vector.load %arg5[%c0_79, %c0_80] : memref<4x32xf32, #tpu.memory_space<vmem>>, vector<4x32xf32>
    tpu.vector_store %arg5[%c0_79, %c0_80], %201 {strides = array<i32>} : memref<4x32xf32, #tpu.memory_space<vmem>>, vector<4x32xf32>,
    %cst_81 = arith.constant 0.000000e+00 : f32
    %203 = vector.shape_cast %194 : vector<4x1xi1> to vector<4x1xi1>
    %204 = vector.broadcast %203 : vector<4x1xi1> to vector<4x32xi1>
    %205 = vector.broadcast %cst_81 : f32 to vector<4x32xf32>
    %206 = arith.select %204, %192, %205 : vector<4x32xi1>, vector<4x32xf32>
    %c0_82 = arith.constant 0 : index
    %207 = arith.index_cast %c3_i32 : i32 to index
    %c0_83 = arith.constant 0 : index
    %c0_84 = arith.constant 0 : index
    %208 = vector.load %arg4[%c0_82, %207, %c0_83, %c0_84] : memref<1x8x4x32xf32, #tpu.memory_space<vmem>>, vector<1x1x4x32xf32>
    %209 = vector.shape_cast %208 : vector<1x1x4x32xf32> to vector<4x32xf32>
    %210 = vector.shape_cast %206 : vector<4x32xf32> to vector<1x1x4x32xf32>
    tpu.vector_store %arg4[%c0_82, %207, %c0_83, %c0_84], %210 {strides = array<i32>} : memref<1x8x4x32xf32, #tpu.memory_space<vmem>>, vector<1x1x4x32xf32>,
    %c4_i32 = arith.constant 4 : i32
    %c0_85 = arith.constant 0 : index
    %c0_86 = arith.constant 0 : index
    %211 = vector.load %arg5[%c0_85, %c0_86] : memref<4x32xf32, #tpu.memory_space<vmem>>, vector<4x32xf32>
    %c0_87 = arith.constant 0 : index
    %c0_88 = arith.constant 0 : index
    %212 = vector.load %arg6[%c0_87, %c0_88] : memref<4x32xf32, #tpu.memory_space<vmem>>, vector<4x32xf32>
    %c0_89 = arith.constant 0 : index
    %213 = arith.index_cast %c4_i32 : i32 to index
    %c0_90 = arith.constant 0 : index
    %c0_91 = arith.constant 0 : index
    %214 = vector.load %arg2[%c0_89, %213, %c0_90, %c0_91] : memref<1x8x4x128xf32, #tpu.memory_space<vmem>>, vector<1x1x4x128xf32>
    %215 = vector.shape_cast %214 : vector<1x1x4x128xf32> to vector<4x128xf32>
    %216 = arith.truncf %211 : vector<4x32xf32> to vector<4x32xbf16>
    %cst_92 = arith.constant dense<0.000000e+00> : vector<4x128xf32>
    %217 = tpu.matmul %216, %6, %cst_92 {dimension_numbers = #tpu.dot_dimension_numbers<[1], [0], [0], [1], [0, 0, 1, 1], [], []>} : vector<4x32xbf16>, vector<32x128xbf16>, vector<4x128xf32> -> vector<4x128xf32>
    %218 = arith.addf %215, %217 : vector<4x128xf32>
    %219 = vector.extract_strided_slice %218 {offsets = [0, 0], sizes = [4, 32], strides = [1, 1]} : vector<4x128xf32> to vector<4x32xf32>
    %220 = arith.negf %219 : vector<4x32xf32>
    %221 = math.exp %220 : vector<4x32xf32>
    %cst_93 = arith.constant 1.000000e+00 : f32
    %222 = vector.broadcast %cst_93 : f32 to vector<4x32xf32>
    %223 = arith.addf %222, %221 : vector<4x32xf32>
    %224 = arith.divf %222, %223 : vector<4x32xf32>
    %225 = vector.extract_strided_slice %218 {offsets = [0, 32], sizes = [4, 32], strides = [1, 1]} : vector<4x128xf32> to vector<4x32xf32>
    %226 = arith.negf %225 : vector<4x32xf32>
    %227 = math.exp %226 : vector<4x32xf32>
    %cst_94 = arith.constant 1.000000e+00 : f32
    %228 = vector.broadcast %cst_94 : f32 to vector<4x32xf32>
    %229 = arith.addf %228, %227 : vector<4x32xf32>
    %230 = arith.divf %228, %229 : vector<4x32xf32>
    %231 = vector.extract_strided_slice %218 {offsets = [0, 64], sizes = [4, 32], strides = [1, 1]} : vector<4x128xf32> to vector<4x32xf32>
    %232 = math.tanh %231 : vector<4x32xf32>
    %233 = vector.extract_strided_slice %218 {offsets = [0, 96], sizes = [4, 32], strides = [1, 1]} : vector<4x128xf32> to vector<4x32xf32>
    %234 = arith.negf %233 : vector<4x32xf32>
    %235 = math.exp %234 : vector<4x32xf32>
    %cst_95 = arith.constant 1.000000e+00 : f32
    %236 = vector.broadcast %cst_95 : f32 to vector<4x32xf32>
    %237 = arith.addf %236, %235 : vector<4x32xf32>
    %238 = arith.divf %236, %237 : vector<4x32xf32>
    %239 = arith.mulf %230, %212 : vector<4x32xf32>
    %240 = arith.mulf %224, %232 : vector<4x32xf32>
    %241 = arith.addf %239, %240 : vector<4x32xf32>
    %242 = math.tanh %241 : vector<4x32xf32>
    %243 = arith.mulf %238, %242 : vector<4x32xf32>
    %244 = vector.broadcast %c4_i32 : i32 to vector<4x1xi32>
    %245 = arith.cmpi slt, %244, %4 : vector<4x1xi32>
    %246 = vector.shape_cast %245 : vector<4x1xi1> to vector<4x1xi1>
    %247 = vector.broadcast %246 : vector<4x1xi1> to vector<4x32xi1>
    %248 = arith.select %247, %241, %212 : vector<4x32xi1>, vector<4x32xf32>
    %c0_96 = arith.constant 0 : index
    %c0_97 = arith.constant 0 : index
    %249 = vector.load %arg6[%c0_96, %c0_97] : memref<4x32xf32, #tpu.memory_space<vmem>>, vector<4x32xf32>
    tpu.vector_store %arg6[%c0_96, %c0_97], %248 {strides = array<i32>} : memref<4x32xf32, #tpu.memory_space<vmem>>, vector<4x32xf32>,
    %250 = vector.shape_cast %245 : vector<4x1xi1> to vector<4x1xi1>
    %251 = vector.broadcast %250 : vector<4x1xi1> to vector<4x32xi1>
    %252 = arith.select %251, %243, %211 : vector<4x32xi1>, vector<4x32xf32>
    %c0_98 = arith.constant 0 : index
    %c0_99 = arith.constant 0 : index
    %253 = vector.load %arg5[%c0_98, %c0_99] : memref<4x32xf32, #tpu.memory_space<vmem>>, vector<4x32xf32>
    tpu.vector_store %arg5[%c0_98, %c0_99], %252 {strides = array<i32>} : memref<4x32xf32, #tpu.memory_space<vmem>>, vector<4x32xf32>,
    %cst_100 = arith.constant 0.000000e+00 : f32
    %254 = vector.shape_cast %245 : vector<4x1xi1> to vector<4x1xi1>
    %255 = vector.broadcast %254 : vector<4x1xi1> to vector<4x32xi1>
    %256 = vector.broadcast %cst_100 : f32 to vector<4x32xf32>
    %257 = arith.select %255, %243, %256 : vector<4x32xi1>, vector<4x32xf32>
    %c0_101 = arith.constant 0 : index
    %258 = arith.index_cast %c4_i32 : i32 to index
    %c0_102 = arith.constant 0 : index
    %c0_103 = arith.constant 0 : index
    %259 = vector.load %arg4[%c0_101, %258, %c0_102, %c0_103] : memref<1x8x4x32xf32, #tpu.memory_space<vmem>>, vector<1x1x4x32xf32>
    %260 = vector.shape_cast %259 : vector<1x1x4x32xf32> to vector<4x32xf32>
    %261 = vector.shape_cast %257 : vector<4x32xf32> to vector<1x1x4x32xf32>
    tpu.vector_store %arg4[%c0_101, %258, %c0_102, %c0_103], %261 {strides = array<i32>} : memref<1x8x4x32xf32, #tpu.memory_space<vmem>>, vector<1x1x4x32xf32>,
    %c5_i32 = arith.constant 5 : i32
    %c0_104 = arith.constant 0 : index
    %c0_105 = arith.constant 0 : index
    %262 = vector.load %arg5[%c0_104, %c0_105] : memref<4x32xf32, #tpu.memory_space<vmem>>, vector<4x32xf32>
    %c0_106 = arith.constant 0 : index
    %c0_107 = arith.constant 0 : index
    %263 = vector.load %arg6[%c0_106, %c0_107] : memref<4x32xf32, #tpu.memory_space<vmem>>, vector<4x32xf32>
    %c0_108 = arith.constant 0 : index
    %264 = arith.index_cast %c5_i32 : i32 to index
    %c0_109 = arith.constant 0 : index
    %c0_110 = arith.constant 0 : index
    %265 = vector.load %arg2[%c0_108, %264, %c0_109, %c0_110] : memref<1x8x4x128xf32, #tpu.memory_space<vmem>>, vector<1x1x4x128xf32>
    %266 = vector.shape_cast %265 : vector<1x1x4x128xf32> to vector<4x128xf32>
    %267 = arith.truncf %262 : vector<4x32xf32> to vector<4x32xbf16>
    %cst_111 = arith.constant dense<0.000000e+00> : vector<4x128xf32>
    %268 = tpu.matmul %267, %6, %cst_111 {dimension_numbers = #tpu.dot_dimension_numbers<[1], [0], [0], [1], [0, 0, 1, 1], [], []>} : vector<4x32xbf16>, vector<32x128xbf16>, vector<4x128xf32> -> vector<4x128xf32>
    %269 = arith.addf %266, %268 : vector<4x128xf32>
    %270 = vector.extract_strided_slice %269 {offsets = [0, 0], sizes = [4, 32], strides = [1, 1]} : vector<4x128xf32> to vector<4x32xf32>
    %271 = arith.negf %270 : vector<4x32xf32>
    %272 = math.exp %271 : vector<4x32xf32>
    %cst_112 = arith.constant 1.000000e+00 : f32
    %273 = vector.broadcast %cst_112 : f32 to vector<4x32xf32>
    %274 = arith.addf %273, %272 : vector<4x32xf32>
    %275 = arith.divf %273, %274 : vector<4x32xf32>
    %276 = vector.extract_strided_slice %269 {offsets = [0, 32], sizes = [4, 32], strides = [1, 1]} : vector<4x128xf32> to vector<4x32xf32>
    %277 = arith.negf %276 : vector<4x32xf32>
    %278 = math.exp %277 : vector<4x32xf32>
    %cst_113 = arith.constant 1.000000e+00 : f32
    %279 = vector.broadcast %cst_113 : f32 to vector<4x32xf32>
    %280 = arith.addf %279, %278 : vector<4x32xf32>
    %281 = arith.divf %279, %280 : vector<4x32xf32>
    %282 = vector.extract_strided_slice %269 {offsets = [0, 64], sizes = [4, 32], strides = [1, 1]} : vector<4x128xf32> to vector<4x32xf32>
    %283 = math.tanh %282 : vector<4x32xf32>
    %284 = vector.extract_strided_slice %269 {offsets = [0, 96], sizes = [4, 32], strides = [1, 1]} : vector<4x128xf32> to vector<4x32xf32>
    %285 = arith.negf %284 : vector<4x32xf32>
    %286 = math.exp %285 : vector<4x32xf32>
    %cst_114 = arith.constant 1.000000e+00 : f32
    %287 = vector.broadcast %cst_114 : f32 to vector<4x32xf32>
    %288 = arith.addf %287, %286 : vector<4x32xf32>
    %289 = arith.divf %287, %288 : vector<4x32xf32>
    %290 = arith.mulf %281, %263 : vector<4x32xf32>
    %291 = arith.mulf %275, %283 : vector<4x32xf32>
    %292 = arith.addf %290, %291 : vector<4x32xf32>
    %293 = math.tanh %292 : vector<4x32xf32>
    %294 = arith.mulf %289, %293 : vector<4x32xf32>
    %295 = vector.broadcast %c5_i32 : i32 to vector<4x1xi32>
    %296 = arith.cmpi slt, %295, %4 : vector<4x1xi32>
    %297 = vector.shape_cast %296 : vector<4x1xi1> to vector<4x1xi1>
    %298 = vector.broadcast %297 : vector<4x1xi1> to vector<4x32xi1>
    %299 = arith.select %298, %292, %263 : vector<4x32xi1>, vector<4x32xf32>
    %c0_115 = arith.constant 0 : index
    %c0_116 = arith.constant 0 : index
    %300 = vector.load %arg6[%c0_115, %c0_116] : memref<4x32xf32, #tpu.memory_space<vmem>>, vector<4x32xf32>
    tpu.vector_store %arg6[%c0_115, %c0_116], %299 {strides = array<i32>} : memref<4x32xf32, #tpu.memory_space<vmem>>, vector<4x32xf32>,
    %301 = vector.shape_cast %296 : vector<4x1xi1> to vector<4x1xi1>
    %302 = vector.broadcast %301 : vector<4x1xi1> to vector<4x32xi1>
    %303 = arith.select %302, %294, %262 : vector<4x32xi1>, vector<4x32xf32>
    %c0_117 = arith.constant 0 : index
    %c0_118 = arith.constant 0 : index
    %304 = vector.load %arg5[%c0_117, %c0_118] : memref<4x32xf32, #tpu.memory_space<vmem>>, vector<4x32xf32>
    tpu.vector_store %arg5[%c0_117, %c0_118], %303 {strides = array<i32>} : memref<4x32xf32, #tpu.memory_space<vmem>>, vector<4x32xf32>,
    %cst_119 = arith.constant 0.000000e+00 : f32
    %305 = vector.shape_cast %296 : vector<4x1xi1> to vector<4x1xi1>
    %306 = vector.broadcast %305 : vector<4x1xi1> to vector<4x32xi1>
    %307 = vector.broadcast %cst_119 : f32 to vector<4x32xf32>
    %308 = arith.select %306, %294, %307 : vector<4x32xi1>, vector<4x32xf32>
    %c0_120 = arith.constant 0 : index
    %309 = arith.index_cast %c5_i32 : i32 to index
    %c0_121 = arith.constant 0 : index
    %c0_122 = arith.constant 0 : index
    %310 = vector.load %arg4[%c0_120, %309, %c0_121, %c0_122] : memref<1x8x4x32xf32, #tpu.memory_space<vmem>>, vector<1x1x4x32xf32>
    %311 = vector.shape_cast %310 : vector<1x1x4x32xf32> to vector<4x32xf32>
    %312 = vector.shape_cast %308 : vector<4x32xf32> to vector<1x1x4x32xf32>
    tpu.vector_store %arg4[%c0_120, %309, %c0_121, %c0_122], %312 {strides = array<i32>} : memref<1x8x4x32xf32, #tpu.memory_space<vmem>>, vector<1x1x4x32xf32>,
    %c6_i32 = arith.constant 6 : i32
    %c0_123 = arith.constant 0 : index
    %c0_124 = arith.constant 0 : index
    %313 = vector.load %arg5[%c0_123, %c0_124] : memref<4x32xf32, #tpu.memory_space<vmem>>, vector<4x32xf32>
    %c0_125 = arith.constant 0 : index
    %c0_126 = arith.constant 0 : index
    %314 = vector.load %arg6[%c0_125, %c0_126] : memref<4x32xf32, #tpu.memory_space<vmem>>, vector<4x32xf32>
    %c0_127 = arith.constant 0 : index
    %315 = arith.index_cast %c6_i32 : i32 to index
    %c0_128 = arith.constant 0 : index
    %c0_129 = arith.constant 0 : index
    %316 = vector.load %arg2[%c0_127, %315, %c0_128, %c0_129] : memref<1x8x4x128xf32, #tpu.memory_space<vmem>>, vector<1x1x4x128xf32>
    %317 = vector.shape_cast %316 : vector<1x1x4x128xf32> to vector<4x128xf32>
    %318 = arith.truncf %313 : vector<4x32xf32> to vector<4x32xbf16>
    %cst_130 = arith.constant dense<0.000000e+00> : vector<4x128xf32>
    %319 = tpu.matmul %318, %6, %cst_130 {dimension_numbers = #tpu.dot_dimension_numbers<[1], [0], [0], [1], [0, 0, 1, 1], [], []>} : vector<4x32xbf16>, vector<32x128xbf16>, vector<4x128xf32> -> vector<4x128xf32>
    %320 = arith.addf %317, %319 : vector<4x128xf32>
    %321 = vector.extract_strided_slice %320 {offsets = [0, 0], sizes = [4, 32], strides = [1, 1]} : vector<4x128xf32> to vector<4x32xf32>
    %322 = arith.negf %321 : vector<4x32xf32>
    %323 = math.exp %322 : vector<4x32xf32>
    %cst_131 = arith.constant 1.000000e+00 : f32
    %324 = vector.broadcast %cst_131 : f32 to vector<4x32xf32>
    %325 = arith.addf %324, %323 : vector<4x32xf32>
    %326 = arith.divf %324, %325 : vector<4x32xf32>
    %327 = vector.extract_strided_slice %320 {offsets = [0, 32], sizes = [4, 32], strides = [1, 1]} : vector<4x128xf32> to vector<4x32xf32>
    %328 = arith.negf %327 : vector<4x32xf32>
    %329 = math.exp %328 : vector<4x32xf32>
    %cst_132 = arith.constant 1.000000e+00 : f32
    %330 = vector.broadcast %cst_132 : f32 to vector<4x32xf32>
    %331 = arith.addf %330, %329 : vector<4x32xf32>
    %332 = arith.divf %330, %331 : vector<4x32xf32>
    %333 = vector.extract_strided_slice %320 {offsets = [0, 64], sizes = [4, 32], strides = [1, 1]} : vector<4x128xf32> to vector<4x32xf32>
    %334 = math.tanh %333 : vector<4x32xf32>
    %335 = vector.extract_strided_slice %320 {offsets = [0, 96], sizes = [4, 32], strides = [1, 1]} : vector<4x128xf32> to vector<4x32xf32>
    %336 = arith.negf %335 : vector<4x32xf32>
    %337 = math.exp %336 : vector<4x32xf32>
    %cst_133 = arith.constant 1.000000e+00 : f32
    %338 = vector.broadcast %cst_133 : f32 to vector<4x32xf32>
    %339 = arith.addf %338, %337 : vector<4x32xf32>
    %340 = arith.divf %338, %339 : vector<4x32xf32>
    %341 = arith.mulf %332, %314 : vector<4x32xf32>
    %342 = arith.mulf %326, %334 : vector<4x32xf32>
    %343 = arith.addf %341, %342 : vector<4x32xf32>
    %344 = math.tanh %343 : vector<4x32xf32>
    %345 = arith.mulf %340, %344 : vector<4x32xf32>
    %346 = vector.broadcast %c6_i32 : i32 to vector<4x1xi32>
    %347 = arith.cmpi slt, %346, %4 : vector<4x1xi32>
    %348 = vector.shape_cast %347 : vector<4x1xi1> to vector<4x1xi1>
    %349 = vector.broadcast %348 : vector<4x1xi1> to vector<4x32xi1>
    %350 = arith.select %349, %343, %314 : vector<4x32xi1>, vector<4x32xf32>
    %c0_134 = arith.constant 0 : index
    %c0_135 = arith.constant 0 : index
    %351 = vector.load %arg6[%c0_134, %c0_135] : memref<4x32xf32, #tpu.memory_space<vmem>>, vector<4x32xf32>
    tpu.vector_store %arg6[%c0_134, %c0_135], %350 {strides = array<i32>} : memref<4x32xf32, #tpu.memory_space<vmem>>, vector<4x32xf32>,
    %352 = vector.shape_cast %347 : vector<4x1xi1> to vector<4x1xi1>
    %353 = vector.broadcast %352 : vector<4x1xi1> to vector<4x32xi1>
    %354 = arith.select %353, %345, %313 : vector<4x32xi1>, vector<4x32xf32>
    %c0_136 = arith.constant 0 : index
    %c0_137 = arith.constant 0 : index
    %355 = vector.load %arg5[%c0_136, %c0_137] : memref<4x32xf32, #tpu.memory_space<vmem>>, vector<4x32xf32>
    tpu.vector_store %arg5[%c0_136, %c0_137], %354 {strides = array<i32>} : memref<4x32xf32, #tpu.memory_space<vmem>>, vector<4x32xf32>,
    %cst_138 = arith.constant 0.000000e+00 : f32
    %356 = vector.shape_cast %347 : vector<4x1xi1> to vector<4x1xi1>
    %357 = vector.broadcast %356 : vector<4x1xi1> to vector<4x32xi1>
    %358 = vector.broadcast %cst_138 : f32 to vector<4x32xf32>
    %359 = arith.select %357, %345, %358 : vector<4x32xi1>, vector<4x32xf32>
    %c0_139 = arith.constant 0 : index
    %360 = arith.index_cast %c6_i32 : i32 to index
    %c0_140 = arith.constant 0 : index
    %c0_141 = arith.constant 0 : index
    %361 = vector.load %arg4[%c0_139, %360, %c0_140, %c0_141] : memref<1x8x4x32xf32, #tpu.memory_space<vmem>>, vector<1x1x4x32xf32>
    %362 = vector.shape_cast %361 : vector<1x1x4x32xf32> to vector<4x32xf32>
    %363 = vector.shape_cast %359 : vector<4x32xf32> to vector<1x1x4x32xf32>
    tpu.vector_store %arg4[%c0_139, %360, %c0_140, %c0_141], %363 {strides = array<i32>} : memref<1x8x4x32xf32, #tpu.memory_space<vmem>>, vector<1x1x4x32xf32>,
    %c7_i32 = arith.constant 7 : i32
    %c0_142 = arith.constant 0 : index
    %c0_143 = arith.constant 0 : index
    %364 = vector.load %arg5[%c0_142, %c0_143] : memref<4x32xf32, #tpu.memory_space<vmem>>, vector<4x32xf32>
    %c0_144 = arith.constant 0 : index
    %c0_145 = arith.constant 0 : index
    %365 = vector.load %arg6[%c0_144, %c0_145] : memref<4x32xf32, #tpu.memory_space<vmem>>, vector<4x32xf32>
    %c0_146 = arith.constant 0 : index
    %366 = arith.index_cast %c7_i32 : i32 to index
    %c0_147 = arith.constant 0 : index
    %c0_148 = arith.constant 0 : index
    %367 = vector.load %arg2[%c0_146, %366, %c0_147, %c0_148] : memref<1x8x4x128xf32, #tpu.memory_space<vmem>>, vector<1x1x4x128xf32>
    %368 = vector.shape_cast %367 : vector<1x1x4x128xf32> to vector<4x128xf32>
    %369 = arith.truncf %364 : vector<4x32xf32> to vector<4x32xbf16>
    %cst_149 = arith.constant dense<0.000000e+00> : vector<4x128xf32>
    %370 = tpu.matmul %369, %6, %cst_149 {dimension_numbers = #tpu.dot_dimension_numbers<[1], [0], [0], [1], [0, 0, 1, 1], [], []>} : vector<4x32xbf16>, vector<32x128xbf16>, vector<4x128xf32> -> vector<4x128xf32>
    %371 = arith.addf %368, %370 : vector<4x128xf32>
    %372 = vector.extract_strided_slice %371 {offsets = [0, 0], sizes = [4, 32], strides = [1, 1]} : vector<4x128xf32> to vector<4x32xf32>
    %373 = arith.negf %372 : vector<4x32xf32>
    %374 = math.exp %373 : vector<4x32xf32>
    %cst_150 = arith.constant 1.000000e+00 : f32
    %375 = vector.broadcast %cst_150 : f32 to vector<4x32xf32>
    %376 = arith.addf %375, %374 : vector<4x32xf32>
    %377 = arith.divf %375, %376 : vector<4x32xf32>
    %378 = vector.extract_strided_slice %371 {offsets = [0, 32], sizes = [4, 32], strides = [1, 1]} : vector<4x128xf32> to vector<4x32xf32>
    %379 = arith.negf %378 : vector<4x32xf32>
    %380 = math.exp %379 : vector<4x32xf32>
    %cst_151 = arith.constant 1.000000e+00 : f32
    %381 = vector.broadcast %cst_151 : f32 to vector<4x32xf32>
    %382 = arith.addf %381, %380 : vector<4x32xf32>
    %383 = arith.divf %381, %382 : vector<4x32xf32>
    %384 = vector.extract_strided_slice %371 {offsets = [0, 64], sizes = [4, 32], strides = [1, 1]} : vector<4x128xf32> to vector<4x32xf32>
    %385 = math.tanh %384 : vector<4x32xf32>
    %386 = vector.extract_strided_slice %371 {offsets = [0, 96], sizes = [4, 32], strides = [1, 1]} : vector<4x128xf32> to vector<4x32xf32>
    %387 = arith.negf %386 : vector<4x32xf32>
    %388 = math.exp %387 : vector<4x32xf32>
    %cst_152 = arith.constant 1.000000e+00 : f32
    %389 = vector.broadcast %cst_152 : f32 to vector<4x32xf32>
    %390 = arith.addf %389, %388 : vector<4x32xf32>
    %391 = arith.divf %389, %390 : vector<4x32xf32>
    %392 = arith.mulf %383, %365 : vector<4x32xf32>
    %393 = arith.mulf %377, %385 : vector<4x32xf32>
    %394 = arith.addf %392, %393 : vector<4x32xf32>
    %395 = math.tanh %394 : vector<4x32xf32>
    %396 = arith.mulf %391, %395 : vector<4x32xf32>
    %397 = vector.broadcast %c7_i32 : i32 to vector<4x1xi32>
    %398 = arith.cmpi slt, %397, %4 : vector<4x1xi32>
    %399 = vector.shape_cast %398 : vector<4x1xi1> to vector<4x1xi1>
    %400 = vector.broadcast %399 : vector<4x1xi1> to vector<4x32xi1>
    %401 = arith.select %400, %394, %365 : vector<4x32xi1>, vector<4x32xf32>
    %c0_153 = arith.constant 0 : index
    %c0_154 = arith.constant 0 : index
    %402 = vector.load %arg6[%c0_153, %c0_154] : memref<4x32xf32, #tpu.memory_space<vmem>>, vector<4x32xf32>
    tpu.vector_store %arg6[%c0_153, %c0_154], %401 {strides = array<i32>} : memref<4x32xf32, #tpu.memory_space<vmem>>, vector<4x32xf32>,
    %403 = vector.shape_cast %398 : vector<4x1xi1> to vector<4x1xi1>
    %404 = vector.broadcast %403 : vector<4x1xi1> to vector<4x32xi1>
    %405 = arith.select %404, %396, %364 : vector<4x32xi1>, vector<4x32xf32>
    %c0_155 = arith.constant 0 : index
    %c0_156 = arith.constant 0 : index
    %406 = vector.load %arg5[%c0_155, %c0_156] : memref<4x32xf32, #tpu.memory_space<vmem>>, vector<4x32xf32>
    tpu.vector_store %arg5[%c0_155, %c0_156], %405 {strides = array<i32>} : memref<4x32xf32, #tpu.memory_space<vmem>>, vector<4x32xf32>,
    %cst_157 = arith.constant 0.000000e+00 : f32
    %407 = vector.shape_cast %398 : vector<4x1xi1> to vector<4x1xi1>
    %408 = vector.broadcast %407 : vector<4x1xi1> to vector<4x32xi1>
    %409 = vector.broadcast %cst_157 : f32 to vector<4x32xf32>
    %410 = arith.select %408, %396, %409 : vector<4x32xi1>, vector<4x32xf32>
    %c0_158 = arith.constant 0 : index
    %411 = arith.index_cast %c7_i32 : i32 to index
    %c0_159 = arith.constant 0 : index
    %c0_160 = arith.constant 0 : index
    %412 = vector.load %arg4[%c0_158, %411, %c0_159, %c0_160] : memref<1x8x4x32xf32, #tpu.memory_space<vmem>>, vector<1x1x4x32xf32>
    %413 = vector.shape_cast %412 : vector<1x1x4x32xf32> to vector<4x32xf32>
    %414 = vector.shape_cast %410 : vector<4x32xf32> to vector<1x1x4x32xf32>
    tpu.vector_store %arg4[%c0_158, %411, %c0_159, %c0_160], %414 {strides = array<i32>} : memref<1x8x4x32xf32, #tpu.memory_space<vmem>>, vector<1x1x4x32xf32>,
    %c8_i32 = arith.constant 8 : i32
    return
  }
  func.func @transform_0(%arg0: i32) -> (i32, i32) {
    %c0_i32 = arith.constant 0 : i32
    %c0_i32_0 = arith.constant 0 : i32
    %c0_i32_1 = arith.constant 0 : i32
    return %c0_i32, %c0_i32_0 : i32, i32
  }
  func.func @transform_1(%arg0: i32) -> (i32, i32, i32, i32) {
    %c0_i32 = arith.constant 0 : i32
    %c0_i32_0 = arith.constant 0 : i32
    %c0_i32_1 = arith.constant 0 : i32
    %c0_i32_2 = arith.constant 0 : i32
    return %arg0, %c0_i32, %c0_i32_0, %c0_i32_1 : i32, i32, i32, i32
  }
  func.func @transform_2(%arg0: i32) -> (i32, i32, i32) {
    %c0_i32 = arith.constant 0 : i32
    %c0_i32_0 = arith.constant 0 : i32
    %c0_i32_1 = arith.constant 0 : i32
    return %arg0, %c0_i32, %c0_i32_0 : i32, i32, i32
  }
  func.func @transform_3(%arg0: i32) -> (i32, i32, i32, i32) {
    %c0_i32 = arith.constant 0 : i32
    %c0_i32_0 = arith.constant 0 : i32
    %c0_i32_1 = arith.constant 0 : i32
    %c0_i32_2 = arith.constant 0 : i32
    return %arg0, %c0_i32, %c0_i32_0, %c0_i32_1 : i32, i32, i32, i32
  }
}

</mosaic_0001>

<llo_original>
// kernel: lstm_encoder_forward.2
$region0: #{lstm_encoder_forward.2}
  #allocation0 [shape = 'u32[]', space=smem, size = 0x4, offset = 0x4, fixed_abs, tag = 'smem constant byte address 0x4 - core index']
  #allocation1 [shape = 'u32[72,128]{1,0:T(1,128)}', space=vmem, size = 0x9000, scoped, tag = 'internal scratch']
  #allocation2 [shape = 'f32[4,32]{1,0:T(4,128)}', space=vmem, size = 0x800, scoped, tag = 'scratch operand']
  #allocation3 [shape = 'f32[4,32]{1,0:T(4,128)}', space=vmem, size = 0x800, scoped, tag = 'scratch operand']
  %s0 = inlined_call_operand.vmem [shape: s32[4,1], index: 0, kind: input, shape index: {}]
  %s1 = inlined_call_operand.vmem [shape: f32[2,8,4,128], index: 1, kind: input, shape index: {}]
  %s2 = inlined_call_operand.vmem [shape: bf16[2,32,128], index: 2, kind: input, shape index: {}]
  %s3 = inlined_call_operand.vmem [shape: f32[2,8,4,32], index: 3, kind: output, shape index: {}]
  %s4 = sld [smem:[#allocation0]]
  $region45: #{lstm_encoder_forward.2} parent=0
    _
  %s6 = ssub.s32 1, %s4
  %s7 = scalar_select 0, %s6, %s4
  loop: start=0, step=1, limit=4
  $region2: #{lstm_encoder_forward.2} parent=0 // loop_pre_header
    _
  $region3: #{lstm_encoder_forward.2} parent=0 // loop_header
    %s9 = sphi 0, %s13
    %p10 = scmp.ge.s32.totalorder %s9, 4
    %s17 = sphi 0, %s17
    %s19 = sphi 0, %s17
    %s20 = sphi 0, %s19
    %s34 = sphi 0, %s20
    %s40 = sphi 0, %s42
    %s43 = sphi 0, %s40
    %s44 = sphi 0, %s43
    %s60 = sphi 0, %s44
    %s66 = sphi 0, %s68
    %s69 = sphi 0, %s66
    %s70 = sphi 0, %s69
    %s86 = sphi 0, %s70
    %s92 = sphi 0, %s94
    %s95 = sphi 0, %s92
    %s96 = sphi 0, %s95
    %s112 = sphi 0, %s96
  $region4: #{lstm_encoder_forward.2} parent=0 // loop_header_branch
    %12 = sbr.rel (%p10) target = $region8
  $region5: #{lstm_encoder_forward.2} parent=0 // loop_body
    %s14 = ssub.s32 %s9, 1
    %s15 = ssub.s32 %s9, 2
    %s16 = sadd.s32 %s9, 1
    %s18 = sadd.s32 %s17, 1
    %p21 = scmp.eq.s32.totalorder %s9, 1
    %p22 = scmp.ne.s32.totalorder %s17, %s19
    %p23 = scmp.eq.s32.totalorder %s9, 0
    %p24 = por %p22, %p23
    %p25 = scmp.ne.s32.totalorder %s17, %s19
    %p26 = scmp.eq.s32.totalorder %s14, 1
    %p27 = por %p25, %p26
    %p28 = scmp.ne.s32.totalorder %s19, %s20
    %p29 = scmp.eq.s32.totalorder %s14, 0
    %p30 = por %p28, %p29
    %p31 = scmp.ne.s32.totalorder %s19, %s20
    %p32 = scmp.eq.s32.totalorder %s15, 1
    %p33 = por %p31, %p32
    %p35 = scmp.ne.s32.totalorder %s20, %s34
    %p36 = scmp.eq.s32.totalorder %s15, 0
    %p37 = por %p35, %p36
    %s38 = ssub.s32 %s9, %s16
    %p39 = scmp.eq.s32.totalorder %s38, 0
    %s41 = sadd.s32 %s40, 1
    %s42 = scalar_select %p39, %s40, %s41
    %p45 = pneg %p39
    %p46 = scmp.eq.s32.totalorder %s9, 1
    %p47 = por %p45, %p46
    %p48 = scmp.ne.s32.totalorder %s40, %s43
    %p49 = scmp.eq.s32.totalorder %s9, 0
    %p50 = por %p48, %p49
    %p51 = scmp.ne.s32.totalorder %s40, %s43
    %p52 = scmp.eq.s32.totalorder %s14, 1
    %p53 = por %p51, %p52
    %p54 = scmp.ne.s32.totalorder %s43, %s44
    %p55 = scmp.eq.s32.totalorder %s14, 0
    %p56 = por %p54, %p55
    %p57 = scmp.ne.s32.totalorder %s43, %s44
    %p58 = scmp.eq.s32.totalorder %s15, 1
    %p59 = por %p57, %p58
    %p61 = scmp.ne.s32.totalorder %s44, %s60
    %p62 = scmp.eq.s32.totalorder %s15, 0
    %p63 = por %p61, %p62
    %s64 = ssub.s32 %s9, %s16
    %p65 = scmp.eq.s32.totalorder %s64, 0
    %s67 = sadd.s32 %s66, 1
    %s68 = scalar_select %p65, %s66, %s67
    %p71 = pneg %p65
    %p72 = scmp.eq.s32.totalorder %s9, 1
    %p73 = por %p71, %p72
    %p74 = scmp.ne.s32.totalorder %s66, %s69
    %p75 = scmp.eq.s32.totalorder %s9, 0
    %p76 = por %p74, %p75
    %p77 = scmp.ne.s32.totalorder %s66, %s69
    %p78 = scmp.eq.s32.totalorder %s14, 1
    %p79 = por %p77, %p78
    %p80 = scmp.ne.s32.totalorder %s69, %s70
    %p81 = scmp.eq.s32.totalorder %s14, 0
    %p82 = por %p80, %p81
    %p83 = scmp.ne.s32.totalorder %s69, %s70
    %p84 = scmp.eq.s32.totalorder %s15, 1
    %p85 = por %p83, %p84
    %p87 = scmp.ne.s32.totalorder %s70, %s86
    %p88 = scmp.eq.s32.totalorder %s15, 0
    %p89 = por %p87, %p88
    %s90 = ssub.s32 %s9, %s16
    %p91 = scmp.eq.s32.totalorder %s90, 0
    %s93 = sadd.s32 %s92, 1
    %s94 = scalar_select %p91, %s92, %s93
    %p97 = pneg %p91
    %p98 = scmp.eq.s32.totalorder %s9, 1
    %p99 = por %p97, %p98
    %p100 = scmp.ne.s32.totalorder %s92, %s95
    %p101 = scmp.eq.s32.totalorder %s9, 0
    %p102 = por %p100, %p101
    %p103 = scmp.ne.s32.totalorder %s92, %s95
    %p104 = scmp.eq.s32.totalorder %s14, 1
    %p105 = por %p103, %p104
    %p106 = scmp.ne.s32.totalorder %s95, %s96
    %p107 = scmp.eq.s32.totalorder %s14, 0
    %p108 = por %p106, %p107
    %p109 = scmp.ne.s32.totalorder %s95, %s96
    %p110 = scmp.eq.s32.totalorder %s15, 1
    %p111 = por %p109, %p110
    %p113 = scmp.ne.s32.totalorder %s96, %s112
    %p114 = scmp.eq.s32.totalorder %s15, 0
    %p115 = por %p113, %p114
    %p116 = scmp.le.s32.totalorder 1, %s9
    %p117 = scmp.lt.s32.totalorder %s9, 3
    %p118 = pnand %p116, %p117
    %p119 = pneg %p118
    // Predicated region
    $region9: #{lstm_encoder_forward.2} parent=5 // pred_check
      _
    $region10: #{lstm_encoder_forward.2} parent=5 // pred_check_branch
      %121 = sbr.rel (%p118) target = $region12
    $region11: #{lstm_encoder_forward.2} parent=5 // pred_region
      %s122 = ssub.s32 %s9, 1
      // Predicated region
      $region13: #{lstm_encoder_forward.2} parent=11 // pred_check
        %p123 = pneg %p30
      $region14: #{lstm_encoder_forward.2} parent=11 // pred_check_branch
        %125 = sbr.rel (%p123) target = $region16
      $region15: #{lstm_encoder_forward.2} parent=11 // pred_region
        _
      $region16: #{lstm_encoder_forward.2} parent=11 // pred_fallthru
        _
    $region12: #{lstm_encoder_forward.2} parent=5 // pred_fallthru
      _
    %p126 = scmp.lt.s32.totalorder %s9, 2
    // Predicated region
    $region17: #{lstm_encoder_forward.2} parent=5 // pred_check
      %p127 = pneg %p126
    $region18: #{lstm_encoder_forward.2} parent=5 // pred_check_branch
      %129 = sbr.rel (%p127) target = $region20
    $region19: #{lstm_encoder_forward.2} parent=5 // pred_region
      // Predicated region
      $region21: #{lstm_encoder_forward.2} parent=19 // pred_check
        %p130 = pneg %p50
      $region22: #{lstm_encoder_forward.2} parent=19 // pred_check_branch
        %132 = sbr.rel (%p130) target = $region24
      $region23: #{lstm_encoder_forward.2} parent=19 // pred_region
        %p133 = scmp.lt.s32.totalorder %s9, 1
        %s134 = scalar_select %p133, %s9, 1
        %s135 = smul.addr %s134, 8
        %s136 = smul.addr %s135, 4
        %s137 = scalar_lea.vmem %s1, %s136
      $region24: #{lstm_encoder_forward.2} parent=19 // pred_fallthru
        _
      // Predicated region
      $region25: #{lstm_encoder_forward.2} parent=19 // pred_check
        %p138 = pneg %p76
      $region26: #{lstm_encoder_forward.2} parent=19 // pred_check_branch
        %140 = sbr.rel (%p138) target = $region28
      $region27: #{lstm_encoder_forward.2} parent=19 // pred_region
        %p141 = scmp.lt.s32.totalorder %s9, 1
        %s142 = scalar_select %p141, %s9, 1
        %s143 = smul.addr %s142, 4
        %s144 = smul.addr %s143, 4
        %s145 = scalar_lea.vmem %s2, %s144
      $region28: #{lstm_encoder_forward.2} parent=19 // pred_fallthru
        _
    $region20: #{lstm_encoder_forward.2} parent=5 // pred_fallthru
      _
    %p146 = scmp.le.s32.totalorder 1, %s9
    %p147 = scmp.lt.s32.totalorder %s9, 3
    %p148 = pnand %p146, %p147
    %p149 = pneg %p148
    // Predicated region
    $region29: #{lstm_encoder_forward.2} parent=5 // pred_check
      _
    $region30: #{lstm_encoder_forward.2} parent=5 // pred_check_branch
      %151 = sbr.rel (%p148) target = $region32
    $region31: #{lstm_encoder_forward.2} parent=5 // pred_region
      %s152 = ssub.s32 %s9, 1
      %p153 = pneg %p30
      %p154 = pneg %p27
      %p155 = scmp.lt.s32.totalorder %s14, 1
      %s156 = scalar_select %p155, %s14, 1
      %s157 = smul.addr %s156, 8
      %s158 = smul.addr %s157, 4
      %s159 = scalar_lea.vmem %s1, %s158
      %p160 = pneg %p56
      %p161 = pneg %p53
      %p162 = scmp.lt.s32.totalorder %s14, 1
      %s163 = scalar_select %p162, %s14, 1
      %s164 = smul.addr %s163, 4
      %s165 = smul.addr %s164, 4
      %s166 = scalar_lea.vmem %s2, %s165
      %p167 = pneg %p82
      %p168 = pneg %p79
      %p169 = pneg %p108
      %p170 = pneg %p105
      %p171 = scmp.lt.s32.totalorder %s14, 1
      %s172 = scalar_select %p171, %s14, 1
      %s173 = smul.addr %s172, 8
      %s174 = smul.addr %s173, 4
      %s175 = scalar_lea.vmem %s3, %s174
      %p176 = scmp.lt.s32.totalorder %s14, 1
      %s177 = scalar_select %p176, %s14, 1
      %s178 = smul.addr %s177, 8
      %s179 = smul.addr %s178, 4
      %s180 = scalar_lea.vmem %s1, %s179
      %p181 = scmp.lt.s32.totalorder %s14, 1
      %s182 = scalar_select %p181, %s14, 1
      %s183 = smul.addr %s182, 4
      %s184 = smul.addr %s183, 4
      %s185 = scalar_lea.vmem %s2, %s184
      %p186 = scmp.lt.s32.totalorder %s14, 1
      %s187 = scalar_select %p186, %s14, 1
      %s188 = smul.addr %s187, 8
      %s189 = smul.addr %s188, 4
      %s190 = scalar_lea.vmem %s3, %s189
      %vm192 = vcmask 257024
      %193 = vst.msk [vmem:[#allocation2] sm:$0xf] %vm192, 0.0
      %194 = vst.msk [vmem:[#allocation3] sm:$0xf] %vm192, 0.0
      %v195 = vld [vmem:[%s0] sm:$0xf]
      %v196 = vld [vmem:[%s185] sm:$0xf]
      %v197 = vld [vmem:[%s185 + $0x4] sm:$0xf]
      %v198 = vld [vmem:[%s185 + $0x8] sm:$0xf]
      %v199 = vld [vmem:[%s185 + $0xc] sm:$0xf]
      %v200 = vld [vmem:[#allocation2] sm:$0xf]
      %v201 = vld [vmem:[#allocation3] sm:$0xf]
      %v202 = vld [vmem:[%s180] sm:$0xf]
      %v203 = vpack.c.bf16 %v200, %v200
      %v208 = vunpack.c.l.b16 %v196
      %v209 = vunpack.c.l.b16 %v197
      %v210 = vunpack.c.l.b16 %v198
      %v211 = vunpack.c.l.b16 %v199
      %v212 = vpack.c.b16 %v209, %v208
      %v213 = vpack.c.b16 %v211, %v210
      %vm216 = vcmask 261120
      %v218 = vsel %vm216, %v203, 0
      %220 = vmatpush.bf16.msra.mxu0 0
      %221 = vmatpush.bf16.msra.mxu0 0
      %222 = vmatpush.bf16.msra.mxu0 0
      %223 = vmatpush.bf16.msra.mxu0 0
      %224 = vmatpush.bf16.msra.mxu0 0
      %225 = vmatpush.bf16.msra.mxu0 0
      %226 = vmatpush.bf16.msra.mxu0 %v213
      %227 = vmatpush.bf16.msra.mxu0 %v212
      %228 = vmatmul.bf16.gmra.mxu0 %v218
      %v229 = vpop.f32.mrf.mxu0
      %v230 = vadd.f32 0.0, %v229
      %v231 = vpop.f32.mrf.mxu0
      %232 = vdwg.mxu0
      %v233 = vadd.f32 %v202, %v230
      %v234 = vxor.u32 %v233, 2147483648
      %v235 = vmul.f32 %v234, 1.442695
      %v236 = vpow.pop %v235
      %v237 = vadd.f32 %v236, 1.0
      %v238 = vrcp.pop %v237
      %v239 = vmul.f32 %v237, %v238
      %v240 = vsub.f32 1.0, %v239
      %v241 = vmul.f32 %v238, %v240
      %v242 = vadd.f32 %v238, %v241
      %vm243 = vweird.f32 %v237
      %vm244 = vweird.f32 %v238
      %vm245 = vmor %vm243, %vm244
      %v246 = vsel %vm245, %v238, %v242
      %v247 = vand.u32 2147483647, %v237
      %vm248 = vcmp.eq.f32.partialorder %v247, 8.507059e+37
      %v249 = vand.u32 %v237, 2147483648
      %v250 = vor.u32 1.1754944e-38, %v249
      %v251 = vsel %vm248, %v250, %v246
      %v252 = vmul.f32 1.0, %v251
      %v253 = vtanh.pop %v233
      %255 = vrot.lane.b32.xlu0 %v201, 32
      %v256 = vpop.permute.xlu0 %255
      %v258 = vmul.f32 %v252, %v256
      %260 = vrot.lane.b32.xlu0 %v253, 64
      %v261 = vpop.permute.xlu0 %260
      %v263 = vmul.f32 %v252, %v261
      %265 = vrot.lane.b32.xlu0 %v263, 32
      %v266 = vpop.permute.xlu0 %265
      %v268 = vadd.f32 %v258, %v266
      %v269 = vtanh.pop %v268
      %271 = vrot.lane.b32.xlu0 %v269, 64
      %v272 = vpop.permute.xlu0 %271
      %v274 = vmul.f32 %v252, %v272
      %vm275 = vcmp.gt.s32.totalorder %v195, 0
      %v276 = vsel %vm275, 1, 0
      %277 = vset.pattern.permute.xlu0 0
      %278 = vperm.xlu0 %277, %v276
      %v279 = vpop.permute.xlu0 %278
      %vm280 = vcmp.eq.s32.totalorder %v279, 1
      %v281 = vsel %vm280, %v268, %v256
      %283 = vrot.lane.b32.xlu0 %v281, 96
      %v284 = vpop.permute.xlu0 %283
      %286 = vst.msk [vmem:[#allocation3] sm:$0xf] %vm192, %v284
      %288 = vrot.lane.b32.xlu0 %v200, 96
      %v289 = vpop.permute.xlu0 %288
      %v291 = vsel %vm280, %v274, %v289
      %293 = vrot.lane.b32.xlu0 %v291, 32
      %v294 = vpop.permute.xlu0 %293
      %296 = vst.msk [vmem:[#allocation2] sm:$0xf] %vm192, %v294
      %v297 = vsel %vm280, %v274, 0.0
      %299 = vrot.lane.b32.xlu0 %v297, 32
      %v300 = vpop.permute.xlu0 %299
      %302 = vst.msk [vmem:[%s190] sm:$0xf] %vm192, %v300
      %v303 = vld [vmem:[#allocation2] sm:$0xf]
      %v304 = vld [vmem:[#allocation3] sm:$0xf]
      %s305 = scalar_lea.vmem %s180, 4
      %v306 = vld [vmem:[%s305] sm:$0xf]
      %v307 = vpack.c.bf16 %v303, %v303
      %v309 = vsel %vm216, %v307, 0
      %311 = vmatpush.bf16.msra.mxu0 0
      %312 = vmatpush.bf16.msra.mxu0 0
      %313 = vmatpush.bf16.msra.mxu0 0
      %314 = vmatpush.bf16.msra.mxu0 0
      %315 = vmatpush.bf16.msra.mxu0 0
      %316 = vmatpush.bf16.msra.mxu0 0
      %317 = vmatpush.bf16.msra.mxu0 %v213
      %318 = vmatpush.bf16.msra.mxu0 %v212
      %319 = vmatmul.bf16.gmra.mxu0 %v309
      %v320 = vpop.f32.mrf.mxu0
      %v321 = vadd.f32 0.0, %v320
      %v322 = vpop.f32.mrf.mxu0
      %323 = vdwg.mxu0
      %v324 = vadd.f32 %v306, %v321
      %v325 = vxor.u32 %v324, 2147483648
      %v326 = vmul.f32 %v325, 1.442695
      %v327 = vpow.pop %v326
      %v328 = vadd.f32 %v327, 1.0
      %v329 = vrcp.pop %v328
      %v330 = vmul.f32 %v328, %v329
      %v331 = vsub.f32 1.0, %v330
      %v332 = vmul.f32 %v329, %v331
      %v333 = vadd.f32 %v329, %v332
      %vm334 = vweird.f32 %v328
      %vm335 = vweird.f32 %v329
      %vm336 = vmor %vm334, %vm335
      %v337 = vsel %vm336, %v329, %v333
      %v338 = vand.u32 2147483647, %v328
      %vm339 = vcmp.eq.f32.partialorder %v338, 8.507059e+37
      %v340 = vand.u32 %v328, 2147483648
      %v341 = vor.u32 1.1754944e-38, %v340
      %v342 = vsel %vm339, %v341, %v337
      %v343 = vmul.f32 1.0, %v342
      %v344 = vtanh.pop %v324
      %346 = vrot.lane.b32.xlu0 %v304, 32
      %v347 = vpop.permute.xlu0 %346
      %v349 = vmul.f32 %v343, %v347
      %351 = vrot.lane.b32.xlu0 %v344, 64
      %v352 = vpop.permute.xlu0 %351
      %v354 = vmul.f32 %v343, %v352
      %356 = vrot.lane.b32.xlu0 %v354, 32
      %v357 = vpop.permute.xlu0 %356
      %v359 = vadd.f32 %v349, %v357
      %v360 = vtanh.pop %v359
      %362 = vrot.lane.b32.xlu0 %v360, 64
      %v363 = vpop.permute.xlu0 %362
      %v365 = vmul.f32 %v343, %v363
      %vm366 = vcmp.gt.s32.totalorder %v195, 1
      %v367 = vsel %vm366, 1, 0
      %368 = vset.pattern.permute.xlu0 0
      %369 = vperm.xlu0 %368, %v367
      %v370 = vpop.permute.xlu0 %369
      %vm371 = vcmp.eq.s32.totalorder %v370, 1
      %v372 = vsel %vm371, %v359, %v347
      %374 = vrot.lane.b32.xlu0 %v372, 96
      %v375 = vpop.permute.xlu0 %374
      %377 = vst.msk [vmem:[#allocation3] sm:$0xf] %vm192, %v375
      %379 = vrot.lane.b32.xlu0 %v303, 96
      %v380 = vpop.permute.xlu0 %379
      %v382 = vsel %vm371, %v365, %v380
      %384 = vrot.lane.b32.xlu0 %v382, 32
      %v385 = vpop.permute.xlu0 %384
      %387 = vst.msk [vmem:[#allocation2] sm:$0xf] %vm192, %v385
      %v388 = vsel %vm371, %v365, 0.0
      %390 = vrot.lane.b32.xlu0 %v388, 32
      %v391 = vpop.permute.xlu0 %390
      %s393 = scalar_lea.vmem %s190, 4
      %394 = vst.msk [vmem:[%s393] sm:$0xf] %vm192, %v391
      %v395 = vld [vmem:[#allocation2] sm:$0xf]
      %v396 = vld [vmem:[#allocation3] sm:$0xf]
      %s397 = scalar_lea.vmem %s180, 8
      %v398 = vld [vmem:[%s397] sm:$0xf]
      %v399 = vpack.c.bf16 %v395, %v395
      %v401 = vsel %vm216, %v399, 0
      %403 = vmatpush.bf16.msra.mxu0 0
      %404 = vmatpush.bf16.msra.mxu0 0
      %405 = vmatpush.bf16.msra.mxu0 0
      %406 = vmatpush.bf16.msra.mxu0 0
      %407 = vmatpush.bf16.msra.mxu0 0
      %408 = vmatpush.bf16.msra.mxu0 0
      %409 = vmatpush.bf16.msra.mxu0 %v213
      %410 = vmatpush.bf16.msra.mxu0 %v212
      %411 = vmatmul.bf16.gmra.mxu0 %v401
      %v412 = vpop.f32.mrf.mxu0
      %v413 = vadd.f32 0.0, %v412
      %v414 = vpop.f32.mrf.mxu0
      %415 = vdwg.mxu0
      %v416 = vadd.f32 %v398, %v413
      %v417 = vxor.u32 %v416, 2147483648
      %v418 = vmul.f32 %v417, 1.442695
      %v419 = vpow.pop %v418
      %v420 = vadd.f32 %v419, 1.0
      %v421 = vrcp.pop %v420
      %v422 = vmul.f32 %v420, %v421
      %v423 = vsub.f32 1.0, %v422
      %v424 = vmul.f32 %v421, %v423
      %v425 = vadd.f32 %v421, %v424
      %vm426 = vweird.f32 %v420
      %vm427 = vweird.f32 %v421
      %vm428 = vmor %vm426, %vm427
      %v429 = vsel %vm428, %v421, %v425
      %v430 = vand.u32 2147483647, %v420
      %vm431 = vcmp.eq.f32.partialorder %v430, 8.507059e+37
      %v432 = vand.u32 %v420, 2147483648
      %v433 = vor.u32 1.1754944e-38, %v432
      %v434 = vsel %vm431, %v433, %v429
      %v435 = vmul.f32 1.0, %v434
      %v436 = vtanh.pop %v416
      %438 = vrot.lane.b32.xlu0 %v396, 32
      %v439 = vpop.permute.xlu0 %438
      %v441 = vmul.f32 %v435, %v439
      %443 = vrot.lane.b32.xlu0 %v436, 64
      %v444 = vpop.permute.xlu0 %443
      %v446 = vmul.f32 %v435, %v444
      %448 = vrot.lane.b32.xlu0 %v446, 32
      %v449 = vpop.permute.xlu0 %448
      %v451 = vadd.f32 %v441, %v449
      %v452 = vtanh.pop %v451
      %454 = vrot.lane.b32.xlu0 %v452, 64
      %v455 = vpop.permute.xlu0 %454
      %v457 = vmul.f32 %v435, %v455
      %vm458 = vcmp.gt.s32.totalorder %v195, 2
      %v459 = vsel %vm458, 1, 0
      %460 = vset.pattern.permute.xlu0 0
      %461 = vperm.xlu0 %460, %v459
      %v462 = vpop.permute.xlu0 %461
      %vm463 = vcmp.eq.s32.totalorder %v462, 1
      %v464 = vsel %vm463, %v451, %v439
      %466 = vrot.lane.b32.xlu0 %v464, 96
      %v467 = vpop.permute.xlu0 %466
      %469 = vst.msk [vmem:[#allocation3] sm:$0xf] %vm192, %v467
      %471 = vrot.lane.b32.xlu0 %v395, 96
      %v472 = vpop.permute.xlu0 %471
      %v474 = vsel %vm463, %v457, %v472
      %476 = vrot.lane.b32.xlu0 %v474, 32
      %v477 = vpop.permute.xlu0 %476
      %479 = vst.msk [vmem:[#allocation2] sm:$0xf] %vm192, %v477
      %v480 = vsel %vm463, %v457, 0.0
      %482 = vrot.lane.b32.xlu0 %v480, 32
      %v483 = vpop.permute.xlu0 %482
      %s485 = scalar_lea.vmem %s190, 8
      %486 = vst.msk [vmem:[%s485] sm:$0xf] %vm192, %v483
      %v487 = vld [vmem:[#allocation2] sm:$0xf]
      %v488 = vld [vmem:[#allocation3] sm:$0xf]
      %s489 = scalar_lea.vmem %s180, 12
      %v490 = vld [vmem:[%s489] sm:$0xf]
      %v491 = vpack.c.bf16 %v487, %v487
      %v493 = vsel %vm216, %v491, 0
      %495 = vmatpush.bf16.msra.mxu0 0
      %496 = vmatpush.bf16.msra.mxu0 0
      %497 = vmatpush.bf16.msra.mxu0 0
      %498 = vmatpush.bf16.msra.mxu0 0
      %499 = vmatpush.bf16.msra.mxu0 0
      %500 = vmatpush.bf16.msra.mxu0 0
      %501 = vmatpush.bf16.msra.mxu0 %v213
      %502 = vmatpush.bf16.msra.mxu0 %v212
      %503 = vmatmul.bf16.gmra.mxu0 %v493
      %v504 = vpop.f32.mrf.mxu0
      %v505 = vadd.f32 0.0, %v504
      %v506 = vpop.f32.mrf.mxu0
      %507 = vdwg.mxu0
      %v508 = vadd.f32 %v490, %v505
      %v509 = vxor.u32 %v508, 2147483648
      %v510 = vmul.f32 %v509, 1.442695
      %v511 = vpow.pop %v510
      %v512 = vadd.f32 %v511, 1.0
      %v513 = vrcp.pop %v512
      %v514 = vmul.f32 %v512, %v513
      %v515 = vsub.f32 1.0, %v514
      %v516 = vmul.f32 %v513, %v515
      %v517 = vadd.f32 %v513, %v516
      %vm518 = vweird.f32 %v512
      %vm519 = vweird.f32 %v513
      %vm520 = vmor %vm518, %vm519
      %v521 = vsel %vm520, %v513, %v517
      %v522 = vand.u32 2147483647, %v512
      %vm523 = vcmp.eq.f32.partialorder %v522, 8.507059e+37
      %v524 = vand.u32 %v512, 2147483648
      %v525 = vor.u32 1.1754944e-38, %v524
      %v526 = vsel %vm523, %v525, %v521
      %v527 = vmul.f32 1.0, %v526
      %v528 = vtanh.pop %v508
      %530 = vrot.lane.b32.xlu0 %v488, 32
      %v531 = vpop.permute.xlu0 %530
      %v533 = vmul.f32 %v527, %v531
      %535 = vrot.lane.b32.xlu0 %v528, 64
      %v536 = vpop.permute.xlu0 %535
      %v538 = vmul.f32 %v527, %v536
      %540 = vrot.lane.b32.xlu0 %v538, 32
      %v541 = vpop.permute.xlu0 %540
      %v543 = vadd.f32 %v533, %v541
      %v544 = vtanh.pop %v543
      %546 = vrot.lane.b32.xlu0 %v544, 64
      %v547 = vpop.permute.xlu0 %546
      %v549 = vmul.f32 %v527, %v547
      %vm550 = vcmp.gt.s32.totalorder %v195, 3
      %v551 = vsel %vm550, 1, 0
      %552 = vset.pattern.permute.xlu0 0
      %553 = vperm.xlu0 %552, %v551
      %v554 = vpop.permute.xlu0 %553
      %vm555 = vcmp.eq.s32.totalorder %v554, 1
      %v556 = vsel %vm555, %v543, %v531
      %558 = vrot.lane.b32.xlu0 %v556, 96
      %v559 = vpop.permute.xlu0 %558
      %561 = vst.msk [vmem:[#allocation3] sm:$0xf] %vm192, %v559
      %563 = vrot.lane.b32.xlu0 %v487, 96
      %v564 = vpop.permute.xlu0 %563
      %v566 = vsel %vm555, %v549, %v564
      %568 = vrot.lane.b32.xlu0 %v566, 32
      %v569 = vpop.permute.xlu0 %568
      %571 = vst.msk [vmem:[#allocation2] sm:$0xf] %vm192, %v569
      %v572 = vsel %vm555, %v549, 0.0
      %574 = vrot.lane.b32.xlu0 %v572, 32
      %v575 = vpop.permute.xlu0 %574
      %s577 = scalar_lea.vmem %s190, 12
      %578 = vst.msk [vmem:[%s577] sm:$0xf] %vm192, %v575
      %v579 = vld [vmem:[#allocation2] sm:$0xf]
      %v580 = vld [vmem:[#allocation3] sm:$0xf]
      %s581 = scalar_lea.vmem %s180, 16
      %v582 = vld [vmem:[%s581] sm:$0xf]
      %v583 = vpack.c.bf16 %v579, %v579
      %v585 = vsel %vm216, %v583, 0
      %587 = vmatpush.bf16.msra.mxu0 0
      %588 = vmatpush.bf16.msra.mxu0 0
      %589 = vmatpush.bf16.msra.mxu0 0
      %590 = vmatpush.bf16.msra.mxu0 0
      %591 = vmatpush.bf16.msra.mxu0 0
      %592 = vmatpush.bf16.msra.mxu0 0
      %593 = vmatpush.bf16.msra.mxu0 %v213
      %594 = vmatpush.bf16.msra.mxu0 %v212
      %595 = vmatmul.bf16.gmra.mxu0 %v585
      %v596 = vpop.f32.mrf.mxu0
      %v597 = vadd.f32 0.0, %v596
      %v598 = vpop.f32.mrf.mxu0
      %599 = vdwg.mxu0
      %v600 = vadd.f32 %v582, %v597
      %v601 = vxor.u32 %v600, 2147483648
      %v602 = vmul.f32 %v601, 1.442695
      %v603 = vpow.pop %v602
      %v604 = vadd.f32 %v603, 1.0
      %v605 = vrcp.pop %v604
      %v606 = vmul.f32 %v604, %v605
      %v607 = vsub.f32 1.0, %v606
      %v608 = vmul.f32 %v605, %v607
      %v609 = vadd.f32 %v605, %v608
      %vm610 = vweird.f32 %v604
      %vm611 = vweird.f32 %v605
      %vm612 = vmor %vm610, %vm611
      %v613 = vsel %vm612, %v605, %v609
      %v614 = vand.u32 2147483647, %v604
      %vm615 = vcmp.eq.f32.partialorder %v614, 8.507059e+37
      %v616 = vand.u32 %v604, 2147483648
      %v617 = vor.u32 1.1754944e-38, %v616
      %v618 = vsel %vm615, %v617, %v613
      %v619 = vmul.f32 1.0, %v618
      %v620 = vtanh.pop %v600
      %622 = vrot.lane.b32.xlu0 %v580, 32
      %v623 = vpop.permute.xlu0 %622
      %v625 = vmul.f32 %v619, %v623
      %627 = vrot.lane.b32.xlu0 %v620, 64
      %v628 = vpop.permute.xlu0 %627
      %v630 = vmul.f32 %v619, %v628
      %632 = vrot.lane.b32.xlu0 %v630, 32
      %v633 = vpop.permute.xlu0 %632
      %v635 = vadd.f32 %v625, %v633
      %v636 = vtanh.pop %v635
      %638 = vrot.lane.b32.xlu0 %v636, 64
      %v639 = vpop.permute.xlu0 %638
      %v641 = vmul.f32 %v619, %v639
      %vm642 = vcmp.gt.s32.totalorder %v195, 4
      %v643 = vsel %vm642, 1, 0
      %644 = vset.pattern.permute.xlu0 0
      %645 = vperm.xlu0 %644, %v643
      %v646 = vpop.permute.xlu0 %645
      %vm647 = vcmp.eq.s32.totalorder %v646, 1
      %v648 = vsel %vm647, %v635, %v623
      %650 = vrot.lane.b32.xlu0 %v648, 96
      %v651 = vpop.permute.xlu0 %650
      %653 = vst.msk [vmem:[#allocation3] sm:$0xf] %vm192, %v651
      %655 = vrot.lane.b32.xlu0 %v579, 96
      %v656 = vpop.permute.xlu0 %655
      %v658 = vsel %vm647, %v641, %v656
      %660 = vrot.lane.b32.xlu0 %v658, 32
      %v661 = vpop.permute.xlu0 %660
      %663 = vst.msk [vmem:[#allocation2] sm:$0xf] %vm192, %v661
      %v664 = vsel %vm647, %v641, 0.0
      %666 = vrot.lane.b32.xlu0 %v664, 32
      %v667 = vpop.permute.xlu0 %666
      %s669 = scalar_lea.vmem %s190, 16
      %670 = vst.msk [vmem:[%s669] sm:$0xf] %vm192, %v667
      %v671 = vld [vmem:[#allocation2] sm:$0xf]
      %v672 = vld [vmem:[#allocation3] sm:$0xf]
      %s673 = scalar_lea.vmem %s180, 20
      %v674 = vld [vmem:[%s673] sm:$0xf]
      %v675 = vpack.c.bf16 %v671, %v671
      %v677 = vsel %vm216, %v675, 0
      %679 = vmatpush.bf16.msra.mxu0 0
      %680 = vmatpush.bf16.msra.mxu0 0
      %681 = vmatpush.bf16.msra.mxu0 0
      %682 = vmatpush.bf16.msra.mxu0 0
      %683 = vmatpush.bf16.msra.mxu0 0
      %684 = vmatpush.bf16.msra.mxu0 0
      %685 = vmatpush.bf16.msra.mxu0 %v213
      %686 = vmatpush.bf16.msra.mxu0 %v212
      %687 = vmatmul.bf16.gmra.mxu0 %v677
      %v688 = vpop.f32.mrf.mxu0
      %v689 = vadd.f32 0.0, %v688
      %v690 = vpop.f32.mrf.mxu0
      %691 = vdwg.mxu0
      %v692 = vadd.f32 %v674, %v689
      %v693 = vxor.u32 %v692, 2147483648
      %v694 = vmul.f32 %v693, 1.442695
      %v695 = vpow.pop %v694
      %v696 = vadd.f32 %v695, 1.0
      %v697 = vrcp.pop %v696
      %v698 = vmul.f32 %v696, %v697
      %v699 = vsub.f32 1.0, %v698
      %v700 = vmul.f32 %v697, %v699
      %v701 = vadd.f32 %v697, %v700
      %vm702 = vweird.f32 %v696
      %vm703 = vweird.f32 %v697
      %vm704 = vmor %vm702, %vm703
      %v705 = vsel %vm704, %v697, %v701
      %v706 = vand.u32 2147483647, %v696
      %vm707 = vcmp.eq.f32.partialorder %v706, 8.507059e+37
      %v708 = vand.u32 %v696, 2147483648
      %v709 = vor.u32 1.1754944e-38, %v708
      %v710 = vsel %vm707, %v709, %v705
      %v711 = vmul.f32 1.0, %v710
      %v712 = vtanh.pop %v692
      %714 = vrot.lane.b32.xlu0 %v672, 32
      %v715 = vpop.permute.xlu0 %714
      %v717 = vmul.f32 %v711, %v715
      %719 = vrot.lane.b32.xlu0 %v712, 64
      %v720 = vpop.permute.xlu0 %719
      %v722 = vmul.f32 %v711, %v720
      %724 = vrot.lane.b32.xlu0 %v722, 32
      %v725 = vpop.permute.xlu0 %724
      %v727 = vadd.f32 %v717, %v725
      %v728 = vtanh.pop %v727
      %730 = vrot.lane.b32.xlu0 %v728, 64
      %v731 = vpop.permute.xlu0 %730
      %v733 = vmul.f32 %v711, %v731
      %vm734 = vcmp.gt.s32.totalorder %v195, 5
      %v735 = vsel %vm734, 1, 0
      %736 = vset.pattern.permute.xlu0 0
      %737 = vperm.xlu0 %736, %v735
      %v738 = vpop.permute.xlu0 %737
      %vm739 = vcmp.eq.s32.totalorder %v738, 1
      %v740 = vsel %vm739, %v727, %v715
      %742 = vrot.lane.b32.xlu0 %v740, 96
      %v743 = vpop.permute.xlu0 %742
      %745 = vst.msk [vmem:[#allocation3] sm:$0xf] %vm192, %v743
      %747 = vrot.lane.b32.xlu0 %v671, 96
      %v748 = vpop.permute.xlu0 %747
      %v750 = vsel %vm739, %v733, %v748
      %752 = vrot.lane.b32.xlu0 %v750, 32
      %v753 = vpop.permute.xlu0 %752
      %755 = vst.msk [vmem:[#allocation2] sm:$0xf] %vm192, %v753
      %v756 = vsel %vm739, %v733, 0.0
      %758 = vrot.lane.b32.xlu0 %v756, 32
      %v759 = vpop.permute.xlu0 %758
      %s761 = scalar_lea.vmem %s190, 20
      %762 = vst.msk [vmem:[%s761] sm:$0xf] %vm192, %v759
      %v763 = vld [vmem:[#allocation2] sm:$0xf]
      %v764 = vld [vmem:[#allocation3] sm:$0xf]
      %s765 = scalar_lea.vmem %s180, 24
      %v766 = vld [vmem:[%s765] sm:$0xf]
      %v767 = vpack.c.bf16 %v763, %v763
      %v769 = vsel %vm216, %v767, 0
      %771 = vmatpush.bf16.msra.mxu0 0
      %772 = vmatpush.bf16.msra.mxu0 0
      %773 = vmatpush.bf16.msra.mxu0 0
      %774 = vmatpush.bf16.msra.mxu0 0
      %775 = vmatpush.bf16.msra.mxu0 0
      %776 = vmatpush.bf16.msra.mxu0 0
      %777 = vmatpush.bf16.msra.mxu0 %v213
      %778 = vmatpush.bf16.msra.mxu0 %v212
      %779 = vmatmul.bf16.gmra.mxu0 %v769
      %v780 = vpop.f32.mrf.mxu0
      %v781 = vadd.f32 0.0, %v780
      %v782 = vpop.f32.mrf.mxu0
      %783 = vdwg.mxu0
      %v784 = vadd.f32 %v766, %v781
      %v785 = vxor.u32 %v784, 2147483648
      %v786 = vmul.f32 %v785, 1.442695
      %v787 = vpow.pop %v786
      %v788 = vadd.f32 %v787, 1.0
      %v789 = vrcp.pop %v788
      %v790 = vmul.f32 %v788, %v789
      %v791 = vsub.f32 1.0, %v790
      %v792 = vmul.f32 %v789, %v791
      %v793 = vadd.f32 %v789, %v792
      %vm794 = vweird.f32 %v788
      %vm795 = vweird.f32 %v789
      %vm796 = vmor %vm794, %vm795
      %v797 = vsel %vm796, %v789, %v793
      %v798 = vand.u32 2147483647, %v788
      %vm799 = vcmp.eq.f32.partialorder %v798, 8.507059e+37
      %v800 = vand.u32 %v788, 2147483648
      %v801 = vor.u32 1.1754944e-38, %v800
      %v802 = vsel %vm799, %v801, %v797
      %v803 = vmul.f32 1.0, %v802
      %v804 = vtanh.pop %v784
      %806 = vrot.lane.b32.xlu0 %v764, 32
      %v807 = vpop.permute.xlu0 %806
      %v809 = vmul.f32 %v803, %v807
      %811 = vrot.lane.b32.xlu0 %v804, 64
      %v812 = vpop.permute.xlu0 %811
      %v814 = vmul.f32 %v803, %v812
      %816 = vrot.lane.b32.xlu0 %v814, 32
      %v817 = vpop.permute.xlu0 %816
      %v819 = vadd.f32 %v809, %v817
      %v820 = vtanh.pop %v819
      %822 = vrot.lane.b32.xlu0 %v820, 64
      %v823 = vpop.permute.xlu0 %822
      %v825 = vmul.f32 %v803, %v823
      %vm826 = vcmp.gt.s32.totalorder %v195, 6
      %v827 = vsel %vm826, 1, 0
      %828 = vset.pattern.permute.xlu0 0
      %829 = vperm.xlu0 %828, %v827
      %v830 = vpop.permute.xlu0 %829
      %vm831 = vcmp.eq.s32.totalorder %v830, 1
      %v832 = vsel %vm831, %v819, %v807
      %834 = vrot.lane.b32.xlu0 %v832, 96
      %v835 = vpop.permute.xlu0 %834
      %837 = vst.msk [vmem:[#allocation3] sm:$0xf] %vm192, %v835
      %839 = vrot.lane.b32.xlu0 %v763, 96
      %v840 = vpop.permute.xlu0 %839
      %v842 = vsel %vm831, %v825, %v840
      %844 = vrot.lane.b32.xlu0 %v842, 32
      %v845 = vpop.permute.xlu0 %844
      %847 = vst.msk [vmem:[#allocation2] sm:$0xf] %vm192, %v845
      %v848 = vsel %vm831, %v825, 0.0
      %850 = vrot.lane.b32.xlu0 %v848, 32
      %v851 = vpop.permute.xlu0 %850
      %s853 = scalar_lea.vmem %s190, 24
      %854 = vst.msk [vmem:[%s853] sm:$0xf] %vm192, %v851
      %v855 = vld [vmem:[#allocation2] sm:$0xf]
      %v856 = vld [vmem:[#allocation3] sm:$0xf]
      %s857 = scalar_lea.vmem %s180, 28
      %v858 = vld [vmem:[%s857] sm:$0xf]
      %v859 = vpack.c.bf16 %v855, %v855
      %v861 = vsel %vm216, %v859, 0
      %863 = vmatpush.bf16.msra.mxu0 0
      %864 = vmatpush.bf16.msra.mxu0 0
      %865 = vmatpush.bf16.msra.mxu0 0
      %866 = vmatpush.bf16.msra.mxu0 0
      %867 = vmatpush.bf16.msra.mxu0 0
      %868 = vmatpush.bf16.msra.mxu0 0
      %869 = vmatpush.bf16.msra.mxu0 %v213
      %870 = vmatpush.bf16.msra.mxu0 %v212
      %871 = vmatmul.bf16.gmra.mxu0 %v861
      %v872 = vpop.f32.mrf.mxu0
      %v873 = vadd.f32 0.0, %v872
      %v874 = vpop.f32.mrf.mxu0
      %875 = vdwg.mxu0
      %v876 = vadd.f32 %v858, %v873
      %v877 = vxor.u32 %v876, 2147483648
      %v878 = vmul.f32 %v877, 1.442695
      %v879 = vpow.pop %v878
      %v880 = vadd.f32 %v879, 1.0
      %v881 = vrcp.pop %v880
      %v882 = vmul.f32 %v880, %v881
      %v883 = vsub.f32 1.0, %v882
      %v884 = vmul.f32 %v881, %v883
      %v885 = vadd.f32 %v881, %v884
      %vm886 = vweird.f32 %v880
      %vm887 = vweird.f32 %v881
      %vm888 = vmor %vm886, %vm887
      %v889 = vsel %vm888, %v881, %v885
      %v890 = vand.u32 2147483647, %v880
      %vm891 = vcmp.eq.f32.partialorder %v890, 8.507059e+37
      %v892 = vand.u32 %v880, 2147483648
      %v893 = vor.u32 1.1754944e-38, %v892
      %v894 = vsel %vm891, %v893, %v889
      %v895 = vmul.f32 1.0, %v894
      %v896 = vtanh.pop %v876
      %898 = vrot.lane.b32.xlu0 %v856, 32
      %v899 = vpop.permute.xlu0 %898
      %v901 = vmul.f32 %v895, %v899
      %903 = vrot.lane.b32.xlu0 %v896, 64
      %v904 = vpop.permute.xlu0 %903
      %v906 = vmul.f32 %v895, %v904
      %908 = vrot.lane.b32.xlu0 %v906, 32
      %v909 = vpop.permute.xlu0 %908
      %v911 = vadd.f32 %v901, %v909
      %v912 = vtanh.pop %v911
      %914 = vrot.lane.b32.xlu0 %v912, 64
      %v915 = vpop.permute.xlu0 %914
      %v917 = vmul.f32 %v895, %v915
      %vm918 = vcmp.gt.s32.totalorder %v195, 7
      %v919 = vsel %vm918, 1, 0
      %920 = vset.pattern.permute.xlu0 0
      %921 = vperm.xlu0 %920, %v919
      %v922 = vpop.permute.xlu0 %921
      %vm923 = vcmp.eq.s32.totalorder %v922, 1
      %v924 = vsel %vm923, %v911, %v899
      %926 = vrot.lane.b32.xlu0 %v924, 96
      %v927 = vpop.permute.xlu0 %926
      %929 = vst.msk [vmem:[#allocation3] sm:$0xf] %vm192, %v927
      %931 = vrot.lane.b32.xlu0 %v855, 96
      %v932 = vpop.permute.xlu0 %931
      %v934 = vsel %vm923, %v917, %v932
      %936 = vrot.lane.b32.xlu0 %v934, 32
      %v937 = vpop.permute.xlu0 %936
      %939 = vst.msk [vmem:[#allocation2] sm:$0xf] %vm192, %v937
      %v940 = vsel %vm923, %v917, 0.0
      %942 = vrot.lane.b32.xlu0 %v940, 32
      %v943 = vpop.permute.xlu0 %942
      %s945 = scalar_lea.vmem %s190, 28
      %946 = vst.msk [vmem:[%s945] sm:$0xf] %vm192, %v943
      %p947 = scmp.lt.s32.totalorder %s14, 1
      %s948 = scalar_select %p947, %s14, 1
      %s949 = smul.addr %s948, 8
      %s950 = smul.addr %s949, 4
      %s951 = scalar_lea.vmem %s3, %s950
      // Predicated region
      $region33: #{lstm_encoder_forward.2} parent=31 // pred_check
        %p952 = pneg %p105
      $region34: #{lstm_encoder_forward.2} parent=31 // pred_check_branch
        %954 = sbr.rel (%p952) target = $region36
      $region35: #{lstm_encoder_forward.2} parent=31 // pred_region
        _
      $region36: #{lstm_encoder_forward.2} parent=31 // pred_fallthru
        _
    $region32: #{lstm_encoder_forward.2} parent=5 // pred_fallthru
      _
    %p955 = scmp.le.s32.totalorder 2, %s9
    // Predicated region
    $region37: #{lstm_encoder_forward.2} parent=5 // pred_check
      %p956 = pneg %p955
    $region38: #{lstm_encoder_forward.2} parent=5 // pred_check_branch
      %958 = sbr.rel (%p956) target = $region40
    $region39: #{lstm_encoder_forward.2} parent=5 // pred_region
      %s959 = ssub.s32 %s9, 2
      // Predicated region
      $region41: #{lstm_encoder_forward.2} parent=39 // pred_check
        %p960 = pneg %p111
      $region42: #{lstm_encoder_forward.2} parent=39 // pred_check_branch
        %962 = sbr.rel (%p960) target = $region44
      $region43: #{lstm_encoder_forward.2} parent=39 // pred_region
        %p963 = scmp.lt.s32.totalorder %s15, 1
        %s964 = scalar_select %p963, %s15, 1
        %s965 = smul.addr %s964, 8
        %s966 = smul.addr %s965, 4
        %s967 = scalar_lea.vmem %s3, %s966
      $region44: #{lstm_encoder_forward.2} parent=39 // pred_fallthru
        _
    $region40: #{lstm_encoder_forward.2} parent=5 // pred_fallthru
      _
  $region6: #{lstm_encoder_forward.2} parent=0 // loop_footer
    %s13 = sadd.s32 1, %s9
  $region7: #{lstm_encoder_forward.2} parent=0 // loop_footer_branch
    %8 = sbr.rel target = $region3
  $region8: #{lstm_encoder_forward.2} parent=0 // loop_exit
    _

</llo_original>
